<compile_context>
chip_gen: v7x
topology: tpu7x:2x2x1
jax: 0.10.0
libtpu: 0.0.40
codegen_flags: <defaults>
</compile_context>

<pallas_src>
import math
import functools

import jax
import jax.numpy as jnp
from jax.experimental import pallas as pl
from jax.experimental.pallas import tpu as pltpu


# --------------------------------------------------------------------------
# Pallas kernel: one (batch element, layer) step of the encoder stack.
# The output block is revisited across the layer axis and acts as the carried
# activation buffer (read previous layer's result, write this layer's).
# --------------------------------------------------------------------------
def encoder_layer_kernel(x_ref, wqkv_ref, bqkv_ref, wo_ref, w1_ref, bf1_ref,
                         w2_ref, vec_ref, o_ref, *, num_heads, compute_dtype,
                         eps=1e-5):
    layer = pl.program_id(1)

    # First layer for this batch element: seed the carried activation buffer.
    @pl.when(layer == 0)
    def _():
        o_ref[...] = x_ref[...]

    S, D = o_ref.shape
    H = num_heads
    dh = D // H
    cdt = compute_dtype

    x = o_ref[...]                                        # (S, D) f32 master copy

    # ---- fused QKV projection: one (S, D) x (D, 3D) MXU matmul --------------
    qkv = jnp.dot(x.astype(cdt), wqkv_ref[...],
                  preferred_element_type=jnp.float32) + bqkv_ref[...]   # (S, 3D)

    # ---- per-head attention; scores are (S, S), softmax exact in f32 --------
    ctx_heads = []
    for h in range(H):                                    # static unroll, H small
        q_h = qkv[:, h * dh:(h + 1) * dh]                 # 1/sqrt(dh) pre-folded
        k_h = qkv[:, D + h * dh:D + (h + 1) * dh]
        v_h = qkv[:, 2 * D + h * dh:2 * D + (h + 1) * dh]
        # q @ k^T without an explicit transpose
        s = jax.lax.dot_general(q_h.astype(cdt), k_h.astype(cdt),
                                (((1,), (1,)), ((), ())),
                                preferred_element_type=jnp.float32)     # (S, S)
        s = s - jnp.max(s, axis=-1, keepdims=True)
        p = jnp.exp(s)
        p = p / jnp.sum(p, axis=-1, keepdims=True)        # exact softmax (f32)
        ctx_heads.append(jnp.dot(p.astype(cdt), v_h.astype(cdt),
                                 preferred_element_type=jnp.float32))   # (S, dh)
    ctx = jnp.concatenate(ctx_heads, axis=-1)             # (S, D)

    # ---- output projection: one (S, D) x (D, D) MXU matmul ------------------
    vec = vec_ref[...]                 # (6, D) rows: bo, g1, beta1, bf2, g2, beta2
    a = jnp.dot(ctx.astype(cdt), wo_ref[...],
                preferred_element_type=jnp.float32) + vec[0:1, :]

    # ---- residual + LayerNorm 1 (f32) ---------------------------------------
    y = x + a
    mu = jnp.mean(y, axis=-1, keepdims=True)
    var = jnp.mean((y - mu) ** 2, axis=-1, keepdims=True)
    y = (y - mu) * jax.lax.rsqrt(var + eps) * vec[1:2, :] + vec[2:3, :]

    # ---- position-wise feed forward -----------------------------------------
    h1 = jnp.dot(y.astype(cdt), w1_ref[...],
                 preferred_element_type=jnp.float32) + bf1_ref[...]
    h1 = jnp.maximum(h1, 0.0)
    ff = jnp.dot(h1.astype(cdt), w2_ref[...],
                 preferred_element_type=jnp.float32) + vec[3:4, :]

    # ---- residual + LayerNorm 2 (f32) ---------------------------------------
    z = y + ff
    mu2 = jnp.mean(z, axis=-1, keepdims=True)
    var2 = jnp.mean((z - mu2) ** 2, axis=-1, keepdims=True)
    o_ref[...] = ((z - mu2) * jax.lax.rsqrt(var2 + eps) * vec[4:5, :]
                  + vec[5:6, :]).astype(o_ref.dtype)


# --------------------------------------------------------------------------
# Wrapper: parameter packing + single pallas_call over grid = (B, L).
# --------------------------------------------------------------------------
def pack_encoder_params(layer_params, num_heads, d_model, d_ff,
                        compute_dtype=jnp.float32):
    """Pack per-layer parameters into a few stacked, layer-indexed arrays."""
    dh = d_model // num_heads
    scale = 1.0 / math.sqrt(dh)
    wqkv, bqkv, wo, w1, bf1, w2, vec_d = [], [], [], [], [], [], []
    for p in layer_params:
        # Fold the 1/sqrt(dh) attention scale into the Q projection once.
        wqkv.append(jnp.concatenate([p["wq"] * scale, p["wk"], p["wv"]], axis=1))
        bqkv.append(jnp.concatenate([p["bq"] * scale, p["bk"], p["bv"]], axis=1))
        wo.append(p["wo"])
        w1.append(p["w1"])
        bf1.append(p["bf1"])
        w2.append(p["w2"])
        vec_d.append(jnp.concatenate(
            [p["bo"], p["g1"], p["beta1"], p["bf2"], p["g2"], p["beta2"]], axis=0))
    return (jnp.stack(wqkv).astype(compute_dtype),   # (L, D, 3D)   matmul operand
            jnp.stack(bqkv).astype(jnp.float32),     # (L, 1, 3D)   post-matmul add
            jnp.stack(wo).astype(compute_dtype),     # (L, D, D)
            jnp.stack(w1).astype(compute_dtype),     # (L, D, d_ff)
            jnp.stack(bf1).astype(jnp.float32),      # (L, 1, d_ff)
            jnp.stack(w2).astype(compute_dtype),     # (L, d_ff, D)
            jnp.stack(vec_d).astype(jnp.float32))    # (L, 6, D)


def encoder_stack_pallas(x, layer_params, num_heads, d_ff,
                         compute_dtype=jnp.bfloat16):
    B, S, D = x.shape
    L = len(layer_params)
    wqkv, bqkv, wo, w1, bf1, w2, vec_d = pack_encoder_params(
        layer_params, num_heads, D, d_ff, compute_dtype)

    kernel = functools.partial(encoder_layer_kernel, num_heads=num_heads,
                               compute_dtype=compute_dtype)

    def xmap(b, l):   # activation blocks: one batch element, layer-invariant
        return (b, 0, 0)

    def wmap(b, l):   # weight blocks: streamed per layer, batch-invariant
        return (l, 0, 0)

    out = pl.pallas_call(
        kernel,
        out_shape=jax.ShapeDtypeStruct((B, S, D), jnp.float32),
        grid_spec=pltpu.PrefetchScalarGridSpec(
            num_scalar_prefetch=0,
            grid=(B, L),                              # batch (parallel), layer (arbitrary)
            in_specs=[
                pl.BlockSpec((None, S, D), xmap),       # embedded + PE input
                pl.BlockSpec((None, D, 3 * D), wmap),   # fused Wq|Wk|Wv
                pl.BlockSpec((None, 1, 3 * D), wmap),   # fused bq|bk|bv
                pl.BlockSpec((None, D, D), wmap),       # Wo
                pl.BlockSpec((None, D, d_ff), wmap),    # W1
                pl.BlockSpec((None, 1, d_ff), wmap),    # b1
                pl.BlockSpec((None, d_ff, D), wmap),    # W2
                pl.BlockSpec((None, 6, D), wmap),       # bo, g1, beta1, bf2, g2, beta2
            ],
            out_specs=pl.BlockSpec((None, S, D), xmap), # carried across layer axis
        ),
        compiler_params=pltpu.CompilerParams(
            dimension_semantics=("parallel", "arbitrary"),
            vmem_limit_bytes=32 * 1024 * 1024,
        ),
    )(x.astype(jnp.float32), wqkv, bqkv, wo, w1, bf1, w2, vec_d)
    return out


# --------------------------------------------------------------------------
# Glue: embedding + sinusoidal positional encoding, parameter init, JAX ref.
# --------------------------------------------------------------------------
def positional_encoding(seq_len, d_model):
    pos = jnp.arange(seq_len, dtype=jnp.float32)[:, None]
    div = jnp.exp(jnp.arange(0, d_model, 2, dtype=jnp.float32)
                  * (-math.log(10000.0) / d_model))
    pe = jnp.zeros((seq_len, d_model), jnp.float32)
    pe = pe.at[:, 0::2].set(jnp.sin(pos * div))
    pe = pe.at[:, 1::2].set(jnp.cos(pos * div))
    return pe


def init_layer_params(key, d_model, d_ff, num_layers):
    def linear(k, din, dout):
        kw, kb = jax.random.split(k)
        w = jax.random.normal(kw, (din, dout), jnp.float32) / math.sqrt(din)
        b = 0.02 * jax.random.normal(kb, (1, dout), jnp.float32)
        return w, b

    layers = []
    for l in range(num_layers):
        ks = jax.random.split(jax.random.fold_in(key, l), 6)
        wq, bq = linear(ks[0], d_model, d_model)
        wk, bk = linear(ks[1], d_model, d_model)
        wv, bv = linear(ks[2], d_model, d_model)
        wo, bo = linear(ks[3], d_model, d_model)
        w1, bf1 = linear(ks[4], d_model, d_ff)
        w2, bf2 = linear(ks[5], d_ff, d_model)
        layers.append(dict(
            wq=wq, bq=bq, wk=wk, bk=bk, wv=wv, bv=bv, wo=wo, bo=bo,
            g1=jnp.ones((1, d_model), jnp.float32),
            beta1=jnp.zeros((1, d_model), jnp.float32),
            w1=w1, bf1=bf1, w2=w2, bf2=bf2,
            g2=jnp.ones((1, d_model), jnp.float32),
            beta2=jnp.zeros((1, d_model), jnp.float32),
        ))
    return layers


def encoder_layer_ref(x, p, num_heads, eps=1e-5):
    B, S, D = x.shape
    dh = D // num_heads
    q = (x @ p["wq"] + p["bq"]).reshape(B, S, num_heads, dh).transpose(0, 2, 1, 3)
    k = (x @ p["wk"] + p["bk"]).reshape(B, S, num_heads, dh).transpose(0, 2, 1, 3)
    v = (x @ p["wv"] + p["bv"]).reshape(B, S, num_heads, dh).transpose(0, 2, 1, 3)
    scores = jnp.einsum("bhqd,bhkd->bhqk", q, k) / math.sqrt(dh)
    attn = jax.nn.softmax(scores, axis=-1)
    a = jnp.einsum("bhqk,bhkd->bhqd", attn, v).transpose(0, 2, 1, 3).reshape(B, S, D)
    a = a @ p["wo"] + p["bo"]
    y = x + a
    mu = jnp.mean(y, -1, keepdims=True)
    var = jnp.mean((y - mu) ** 2, -1, keepdims=True)
    y = (y - mu) * jax.lax.rsqrt(var + eps) * p["g1"] + p["beta1"]
    ff = jnp.maximum(y @ p["w1"] + p["bf1"], 0.0) @ p["w2"] + p["bf2"]
    z = y + ff
    mu2 = jnp.mean(z, -1, keepdims=True)
    var2 = jnp.mean((z - mu2) ** 2, -1, keepdims=True)
    return (z - mu2) * jax.lax.rsqrt(var2 + eps) * p["g2"] + p["beta2"]


# --------------------------------------------------------------------------
if __name__ == "__main__":
    src_vocab_size, d_model, num_layers, num_heads, d_ff = 50, 32, 2, 4, 64
    B, S = 2, 8

    key = jax.random.PRNGKey(0)
    k_emb, k_par, k_src = jax.random.split(key, 3)

    embedding_table = jax.random.normal(k_emb, (src_vocab_size, d_model), jnp.float32)
    layer_params = init_layer_params(k_par, d_model, d_ff, num_layers)
    src = jax.random.randint(k_src, (B, S), 0, src_vocab_size)

    # Embedding * sqrt(d_model) + positional encoding (glue, plain JAX).
    x = embedding_table[src] * math.sqrt(d_model)
    x = x + positional_encoding(S, d_model)[None, :, :]

    # Pure-JAX reference (f32).
    ref = x
    for p in layer_params:
        ref = encoder_layer_ref(ref, p, num_heads)

    # f32 Pallas encoder stack: whole stack in one kernel launch.
    out_f32 = jax.block_until_ready(
        encoder_stack_pallas(x, layer_params, num_heads, d_ff,
                             compute_dtype=jnp.float32))
    assert out_f32.shape == (B, S, d_model)
    err_f32 = float(jnp.max(jnp.abs(out_f32 - ref)))
    # Tolerance accommodates MXU multi-pass f32 matmul rounding differences.
    assert jnp.allclose(out_f32, ref, atol=2e-2, rtol=2e-2), \
        f"f32 mismatch vs reference (max abs err {err_f32})"

    # bf16-matmul variant (MXU-native path recommended for v5e/v6e/v7x);
    # softmax / LayerNorm remain f32, so only matmul rounding differs.
    out_bf16 = jax.block_until_ready(
        encoder_stack_pallas(x, layer_params, num_heads, d_ff,
                             compute_dtype=jnp.bfloat16))
    err_bf16 = float(jnp.max(jnp.abs(out_bf16 - ref)))
    assert jnp.allclose(out_bf16, ref, atol=1e-1, rtol=1e-1), \
        f"bf16 mismatch vs reference (max abs err {err_bf16})"

    print("KERNEL_OK")
</pallas_src>

<mosaic_0001>
module attributes {stable_mosaic.version = 11 : i64} {
  func.func @encoder_layer_kernel(%arg0: i32, %arg1: i32, %arg2: memref<1x8x32xf32, #tpu.memory_space<vmem>>, %arg3: memref<1x32x96xf32, #tpu.memory_space<vmem>>, %arg4: memref<1x1x96xf32, #tpu.memory_space<vmem>>, %arg5: memref<1x32x32xf32, #tpu.memory_space<vmem>>, %arg6: memref<1x32x64xf32, #tpu.memory_space<vmem>>, %arg7: memref<1x1x64xf32, #tpu.memory_space<vmem>>, %arg8: memref<1x64x32xf32, #tpu.memory_space<vmem>>, %arg9: memref<1x6x32xf32, #tpu.memory_space<vmem>>, %arg10: memref<1x8x32xf32, #tpu.memory_space<vmem>>) attributes {dimension_semantics = [#tpu.dimension_semantics<parallel>, #tpu.dimension_semantics<arbitrary>], iteration_bounds = array<i64: 2, 2>, scalar_prefetch = 0 : i64, scratch_operands = 0 : i64, tpu.core_type = #tpu.core_type<tc>, window_params = [{transform_indices = @transform_0, window_bounds = array<i64: 1, 8, 32>}, {transform_indices = @transform_1, window_bounds = array<i64: 1, 32, 96>}, {transform_indices = @transform_2, window_bounds = array<i64: 1, 1, 96>}, {transform_indices = @transform_3, window_bounds = array<i64: 1, 32, 32>}, {transform_indices = @transform_4, window_bounds = array<i64: 1, 32, 64>}, {transform_indices = @transform_5, window_bounds = array<i64: 1, 1, 64>}, {transform_indices = @transform_6, window_bounds = array<i64: 1, 64, 32>}, {transform_indices = @transform_7, window_bounds = array<i64: 1, 6, 32>}, {transform_indices = @transform_8, window_bounds = array<i64: 1, 8, 32>}]} {
    %c0_i32 = arith.constant 0 : i32
    %0 = arith.cmpi eq, %arg1, %c0_i32 : i32
    %1 = arith.extui %0 : i1 to i32
    %c0_i32_0 = arith.constant 0 : i32
    %2 = arith.cmpi ne, %1, %c0_i32_0 : i32
    scf.if %2 {
      %c0_57 = arith.constant 0 : index
      %c0_58 = arith.constant 0 : index
      %c0_59 = arith.constant 0 : index
      %145 = vector.load %arg2[%c0_57, %c0_58, %c0_59] : memref<1x8x32xf32, #tpu.memory_space<vmem>>, vector<1x8x32xf32>
      %146 = vector.shape_cast %145 : vector<1x8x32xf32> to vector<8x32xf32>
      %c0_60 = arith.constant 0 : index
      %c0_61 = arith.constant 0 : index
      %c0_62 = arith.constant 0 : index
      %147 = vector.load %arg10[%c0_60, %c0_61, %c0_62] : memref<1x8x32xf32, #tpu.memory_space<vmem>>, vector<1x8x32xf32>
      %148 = vector.shape_cast %147 : vector<1x8x32xf32> to vector<8x32xf32>
      %149 = vector.shape_cast %146 : vector<8x32xf32> to vector<1x8x32xf32>
      tpu.vector_store %arg10[%c0_60, %c0_61, %c0_62], %149 {strides = array<i32>} : memref<1x8x32xf32, #tpu.memory_space<vmem>>, vector<1x8x32xf32>,
    } else {
    }
    %c0 = arith.constant 0 : index
    %c0_1 = arith.constant 0 : index
    %c0_2 = arith.constant 0 : index
    %3 = vector.load %arg10[%c0, %c0_1, %c0_2] : memref<1x8x32xf32, #tpu.memory_space<vmem>>, vector<1x8x32xf32>
    %4 = vector.shape_cast %3 : vector<1x8x32xf32> to vector<8x32xf32>
    %c0_3 = arith.constant 0 : index
    %c0_4 = arith.constant 0 : index
    %c0_5 = arith.constant 0 : index
    %5 = vector.load %arg3[%c0_3, %c0_4, %c0_5] : memref<1x32x96xf32, #tpu.memory_space<vmem>>, vector<1x32x96xf32>
    %6 = vector.shape_cast %5 : vector<1x32x96xf32> to vector<32x96xf32>
    %cst = arith.constant dense<0.000000e+00> : vector<8x96xf32>
    %7 = tpu.matmul %4, %6, %cst {dimension_numbers = #tpu.dot_dimension_numbers<[1], [0], [0], [1], [0, 0, 1, 1], [], []>} : vector<8x32xf32>, vector<32x96xf32>, vector<8x96xf32> -> vector<8x96xf32>
    %c0_6 = arith.constant 0 : index
    %c0_7 = arith.constant 0 : index
    %c0_8 = arith.constant 0 : index
    %8 = vector.load %arg4[%c0_6, %c0_7, %c0_8] : memref<1x1x96xf32, #tpu.memory_space<vmem>>, vector<1x1x96xf32>
    %9 = vector.shape_cast %8 : vector<1x1x96xf32> to vector<1x96xf32>
    %10 = vector.broadcast %9 : vector<1x96xf32> to vector<8x96xf32>
    %11 = arith.addf %7, %10 : vector<8x96xf32>
    %12 = vector.extract_strided_slice %11 {offsets = [0, 0], sizes = [8, 8], strides = [1, 1]} : vector<8x96xf32> to vector<8x8xf32>
    %13 = vector.extract_strided_slice %11 {offsets = [0, 32], sizes = [8, 8], strides = [1, 1]} : vector<8x96xf32> to vector<8x8xf32>
    %14 = vector.extract_strided_slice %11 {offsets = [0, 64], sizes = [8, 8], strides = [1, 1]} : vector<8x96xf32> to vector<8x8xf32>
    %cst_9 = arith.constant dense<0.000000e+00> : vector<8x8xf32>
    %15 = tpu.matmul %12, %13, %cst_9 {dimension_numbers = #tpu.dot_dimension_numbers<[1], [1], [0], [0], [0, 0, 1, 0], [], []>} : vector<8x8xf32>, vector<8x8xf32>, vector<8x8xf32> -> vector<8x8xf32>
    %cst_10 = arith.constant dense<0xFF800000> : vector<8xf32>
    %16 = vector.multi_reduction <maximumf>, %15, %cst_10 [1] : vector<8x8xf32> to vector<8xf32>
    %17 = vector.shape_cast %16 : vector<8xf32> to vector<8x1xf32>
    %18 = vector.broadcast %17 : vector<8x1xf32> to vector<8x8xf32>
    %19 = arith.subf %15, %18 : vector<8x8xf32>
    %20 = math.exp %19 : vector<8x8xf32>
    %cst_11 = arith.constant dense<0.000000e+00> : vector<8xf32>
    %21 = vector.multi_reduction <add>, %20, %cst_11 [1] : vector<8x8xf32> to vector<8xf32>
    %22 = vector.shape_cast %21 : vector<8xf32> to vector<8x1xf32>
    %23 = vector.broadcast %22 : vector<8x1xf32> to vector<8x8xf32>
    %24 = arith.divf %20, %23 : vector<8x8xf32>
    %cst_12 = arith.constant dense<0.000000e+00> : vector<8x8xf32>
    %25 = tpu.matmul %24, %14, %cst_12 {dimension_numbers = #tpu.dot_dimension_numbers<[1], [0], [0], [1], [0, 0, 1, 1], [], []>} : vector<8x8xf32>, vector<8x8xf32>, vector<8x8xf32> -> vector<8x8xf32>
    %26 = vector.extract_strided_slice %11 {offsets = [0, 8], sizes = [8, 8], strides = [1, 1]} : vector<8x96xf32> to vector<8x8xf32>
    %27 = vector.extract_strided_slice %11 {offsets = [0, 40], sizes = [8, 8], strides = [1, 1]} : vector<8x96xf32> to vector<8x8xf32>
    %28 = vector.extract_strided_slice %11 {offsets = [0, 72], sizes = [8, 8], strides = [1, 1]} : vector<8x96xf32> to vector<8x8xf32>
    %cst_13 = arith.constant dense<0.000000e+00> : vector<8x8xf32>
    %29 = tpu.matmul %26, %27, %cst_13 {dimension_numbers = #tpu.dot_dimension_numbers<[1], [1], [0], [0], [0, 0, 1, 0], [], []>} : vector<8x8xf32>, vector<8x8xf32>, vector<8x8xf32> -> vector<8x8xf32>
    %cst_14 = arith.constant dense<0xFF800000> : vector<8xf32>
    %30 = vector.multi_reduction <maximumf>, %29, %cst_14 [1] : vector<8x8xf32> to vector<8xf32>
    %31 = vector.shape_cast %30 : vector<8xf32> to vector<8x1xf32>
    %32 = vector.broadcast %31 : vector<8x1xf32> to vector<8x8xf32>
    %33 = arith.subf %29, %32 : vector<8x8xf32>
    %34 = math.exp %33 : vector<8x8xf32>
    %cst_15 = arith.constant dense<0.000000e+00> : vector<8xf32>
    %35 = vector.multi_reduction <add>, %34, %cst_15 [1] : vector<8x8xf32> to vector<8xf32>
    %36 = vector.shape_cast %35 : vector<8xf32> to vector<8x1xf32>
    %37 = vector.broadcast %36 : vector<8x1xf32> to vector<8x8xf32>
    %38 = arith.divf %34, %37 : vector<8x8xf32>
    %cst_16 = arith.constant dense<0.000000e+00> : vector<8x8xf32>
    %39 = tpu.matmul %38, %28, %cst_16 {dimension_numbers = #tpu.dot_dimension_numbers<[1], [0], [0], [1], [0, 0, 1, 1], [], []>} : vector<8x8xf32>, vector<8x8xf32>, vector<8x8xf32> -> vector<8x8xf32>
    %40 = vector.extract_strided_slice %11 {offsets = [0, 16], sizes = [8, 8], strides = [1, 1]} : vector<8x96xf32> to vector<8x8xf32>
    %41 = vector.extract_strided_slice %11 {offsets = [0, 48], sizes = [8, 8], strides = [1, 1]} : vector<8x96xf32> to vector<8x8xf32>
    %42 = vector.extract_strided_slice %11 {offsets = [0, 80], sizes = [8, 8], strides = [1, 1]} : vector<8x96xf32> to vector<8x8xf32>
    %cst_17 = arith.constant dense<0.000000e+00> : vector<8x8xf32>
    %43 = tpu.matmul %40, %41, %cst_17 {dimension_numbers = #tpu.dot_dimension_numbers<[1], [1], [0], [0], [0, 0, 1, 0], [], []>} : vector<8x8xf32>, vector<8x8xf32>, vector<8x8xf32> -> vector<8x8xf32>
    %cst_18 = arith.constant dense<0xFF800000> : vector<8xf32>
    %44 = vector.multi_reduction <maximumf>, %43, %cst_18 [1] : vector<8x8xf32> to vector<8xf32>
    %45 = vector.shape_cast %44 : vector<8xf32> to vector<8x1xf32>
    %46 = vector.broadcast %45 : vector<8x1xf32> to vector<8x8xf32>
    %47 = arith.subf %43, %46 : vector<8x8xf32>
    %48 = math.exp %47 : vector<8x8xf32>
    %cst_19 = arith.constant dense<0.000000e+00> : vector<8xf32>
    %49 = vector.multi_reduction <add>, %48, %cst_19 [1] : vector<8x8xf32> to vector<8xf32>
    %50 = vector.shape_cast %49 : vector<8xf32> to vector<8x1xf32>
    %51 = vector.broadcast %50 : vector<8x1xf32> to vector<8x8xf32>
    %52 = arith.divf %48, %51 : vector<8x8xf32>
    %cst_20 = arith.constant dense<0.000000e+00> : vector<8x8xf32>
    %53 = tpu.matmul %52, %42, %cst_20 {dimension_numbers = #tpu.dot_dimension_numbers<[1], [0], [0], [1], [0, 0, 1, 1], [], []>} : vector<8x8xf32>, vector<8x8xf32>, vector<8x8xf32> -> vector<8x8xf32>
    %54 = vector.extract_strided_slice %11 {offsets = [0, 24], sizes = [8, 8], strides = [1, 1]} : vector<8x96xf32> to vector<8x8xf32>
    %55 = vector.extract_strided_slice %11 {offsets = [0, 56], sizes = [8, 8], strides = [1, 1]} : vector<8x96xf32> to vector<8x8xf32>
    %56 = vector.extract_strided_slice %11 {offsets = [0, 88], sizes = [8, 8], strides = [1, 1]} : vector<8x96xf32> to vector<8x8xf32>
    %cst_21 = arith.constant dense<0.000000e+00> : vector<8x8xf32>
    %57 = tpu.matmul %54, %55, %cst_21 {dimension_numbers = #tpu.dot_dimension_numbers<[1], [1], [0], [0], [0, 0, 1, 0], [], []>} : vector<8x8xf32>, vector<8x8xf32>, vector<8x8xf32> -> vector<8x8xf32>
    %cst_22 = arith.constant dense<0xFF800000> : vector<8xf32>
    %58 = vector.multi_reduction <maximumf>, %57, %cst_22 [1] : vector<8x8xf32> to vector<8xf32>
    %59 = vector.shape_cast %58 : vector<8xf32> to vector<8x1xf32>
    %60 = vector.broadcast %59 : vector<8x1xf32> to vector<8x8xf32>
    %61 = arith.subf %57, %60 : vector<8x8xf32>
    %62 = math.exp %61 : vector<8x8xf32>
    %cst_23 = arith.constant dense<0.000000e+00> : vector<8xf32>
    %63 = vector.multi_reduction <add>, %62, %cst_23 [1] : vector<8x8xf32> to vector<8xf32>
    %64 = vector.shape_cast %63 : vector<8xf32> to vector<8x1xf32>
    %65 = vector.broadcast %64 : vector<8x1xf32> to vector<8x8xf32>
    %66 = arith.divf %62, %65 : vector<8x8xf32>
    %cst_24 = arith.constant dense<0.000000e+00> : vector<8x8xf32>
    %67 = tpu.matmul %66, %56, %cst_24 {dimension_numbers = #tpu.dot_dimension_numbers<[1], [0], [0], [1], [0, 0, 1, 1], [], []>} : vector<8x8xf32>, vector<8x8xf32>, vector<8x8xf32> -> vector<8x8xf32>
    %68 = tpu.concatenate %25, %39, %53, %67 in 1 : vector<8x8xf32>, vector<8x8xf32>, vector<8x8xf32>, vector<8x8xf32> -> vector<8x32xf32>
    %c0_25 = arith.constant 0 : index
    %c0_26 = arith.constant 0 : index
    %c0_27 = arith.constant 0 : index
    %69 = vector.load %arg9[%c0_25, %c0_26, %c0_27] : memref<1x6x32xf32, #tpu.memory_space<vmem>>, vector<1x6x32xf32>
    %70 = vector.shape_cast %69 : vector<1x6x32xf32> to vector<6x32xf32>
    %c0_28 = arith.constant 0 : index
    %c0_29 = arith.constant 0 : index
    %c0_30 = arith.constant 0 : index
    %71 = vector.load %arg5[%c0_28, %c0_29, %c0_30] : memref<1x32x32xf32, #tpu.memory_space<vmem>>, vector<1x32x32xf32>
    %72 = vector.shape_cast %71 : vector<1x32x32xf32> to vector<32x32xf32>
    %cst_31 = arith.constant dense<0.000000e+00> : vector<8x32xf32>
    %73 = tpu.matmul %68, %72, %cst_31 {dimension_numbers = #tpu.dot_dimension_numbers<[1], [0], [0], [1], [0, 0, 1, 1], [], []>} : vector<8x32xf32>, vector<32x32xf32>, vector<8x32xf32> -> vector<8x32xf32>
    %74 = vector.extract_strided_slice %70 {offsets = [0, 0], sizes = [1, 32], strides = [1, 1]} : vector<6x32xf32> to vector<1x32xf32>
    %75 = vector.broadcast %74 : vector<1x32xf32> to vector<8x32xf32>
    %76 = arith.addf %73, %75 : vector<8x32xf32>
    %77 = arith.addf %4, %76 : vector<8x32xf32>
    %cst_32 = arith.constant dense<0.000000e+00> : vector<8xf32>
    %78 = vector.multi_reduction <add>, %77, %cst_32 [1] : vector<8x32xf32> to vector<8xf32>
    %79 = vector.shape_cast %78 : vector<8xf32> to vector<8x1xf32>
    %cst_33 = arith.constant 3.200000e+01 : f32
    %80 = vector.broadcast %cst_33 : f32 to vector<8x1xf32>
    %81 = arith.divf %79, %80 : vector<8x1xf32>
    %82 = vector.broadcast %81 : vector<8x1xf32> to vector<8x32xf32>
    %83 = arith.subf %77, %82 : vector<8x32xf32>
    %84 = arith.mulf %83, %83 : vector<8x32xf32>
    %cst_34 = arith.constant dense<0.000000e+00> : vector<8xf32>
    %85 = vector.multi_reduction <add>, %84, %cst_34 [1] : vector<8x32xf32> to vector<8xf32>
    %86 = vector.shape_cast %85 : vector<8xf32> to vector<8x1xf32>
    %cst_35 = arith.constant 3.200000e+01 : f32
    %87 = vector.broadcast %cst_35 : f32 to vector<8x1xf32>
    %88 = arith.divf %86, %87 : vector<8x1xf32>
    %89 = vector.broadcast %81 : vector<8x1xf32> to vector<8x32xf32>
    %90 = arith.subf %77, %89 : vector<8x32xf32>
    %cst_36 = arith.constant 9.99999974E-6 : f32
    %91 = vector.broadcast %cst_36 : f32 to vector<8x1xf32>
    %92 = arith.addf %88, %91 : vector<8x1xf32>
    %93 = math.rsqrt %92 : vector<8x1xf32>
    %94 = vector.broadcast %93 : vector<8x1xf32> to vector<8x32xf32>
    %95 = arith.mulf %90, %94 : vector<8x32xf32>
    %96 = vector.extract_strided_slice %70 {offsets = [1, 0], sizes = [1, 32], strides = [1, 1]} : vector<6x32xf32> to vector<1x32xf32>
    %97 = vector.broadcast %96 : vector<1x32xf32> to vector<8x32xf32>
    %98 = arith.mulf %95, %97 : vector<8x32xf32>
    %99 = vector.extract_strided_slice %70 {offsets = [2, 0], sizes = [1, 32], strides = [1, 1]} : vector<6x32xf32> to vector<1x32xf32>
    %100 = vector.broadcast %99 : vector<1x32xf32> to vector<8x32xf32>
    %101 = arith.addf %98, %100 : vector<8x32xf32>
    %c0_37 = arith.constant 0 : index
    %c0_38 = arith.constant 0 : index
    %c0_39 = arith.constant 0 : index
    %102 = vector.load %arg6[%c0_37, %c0_38, %c0_39] : memref<1x32x64xf32, #tpu.memory_space<vmem>>, vector<1x32x64xf32>
    %103 = vector.shape_cast %102 : vector<1x32x64xf32> to vector<32x64xf32>
    %cst_40 = arith.constant dense<0.000000e+00> : vector<8x64xf32>
    %104 = tpu.matmul %101, %103, %cst_40 {dimension_numbers = #tpu.dot_dimension_numbers<[1], [0], [0], [1], [0, 0, 1, 1], [], []>} : vector<8x32xf32>, vector<32x64xf32>, vector<8x64xf32> -> vector<8x64xf32>
    %c0_41 = arith.constant 0 : index
    %c0_42 = arith.constant 0 : index
    %c0_43 = arith.constant 0 : index
    %105 = vector.load %arg7[%c0_41, %c0_42, %c0_43] : memref<1x1x64xf32, #tpu.memory_space<vmem>>, vector<1x1x64xf32>
    %106 = vector.shape_cast %105 : vector<1x1x64xf32> to vector<1x64xf32>
    %107 = vector.broadcast %106 : vector<1x64xf32> to vector<8x64xf32>
    %108 = arith.addf %104, %107 : vector<8x64xf32>
    %cst_44 = arith.constant 0.000000e+00 : f32
    %109 = vector.broadcast %cst_44 : f32 to vector<8x64xf32>
    %110 = arith.maximumf %108, %109 : vector<8x64xf32>
    %c0_45 = arith.constant 0 : index
    %c0_46 = arith.constant 0 : index
    %c0_47 = arith.constant 0 : index
    %111 = vector.load %arg8[%c0_45, %c0_46, %c0_47] : memref<1x64x32xf32, #tpu.memory_space<vmem>>, vector<1x64x32xf32>
    %112 = vector.shape_cast %111 : vector<1x64x32xf32> to vector<64x32xf32>
    %cst_48 = arith.constant dense<0.000000e+00> : vector<8x32xf32>
    %113 = tpu.matmul %110, %112, %cst_48 {dimension_numbers = #tpu.dot_dimension_numbers<[1], [0], [0], [1], [0, 0, 1, 1], [], []>} : vector<8x64xf32>, vector<64x32xf32>, vector<8x32xf32> -> vector<8x32xf32>
    %114 = vector.extract_strided_slice %70 {offsets = [3, 0], sizes = [1, 32], strides = [1, 1]} : vector<6x32xf32> to vector<1x32xf32>
    %115 = vector.broadcast %114 : vector<1x32xf32> to vector<8x32xf32>
    %116 = arith.addf %113, %115 : vector<8x32xf32>
    %117 = arith.addf %101, %116 : vector<8x32xf32>
    %cst_49 = arith.constant dense<0.000000e+00> : vector<8xf32>
    %118 = vector.multi_reduction <add>, %117, %cst_49 [1] : vector<8x32xf32> to vector<8xf32>
    %119 = vector.shape_cast %118 : vector<8xf32> to vector<8x1xf32>
    %cst_50 = arith.constant 3.200000e+01 : f32
    %120 = vector.broadcast %cst_50 : f32 to vector<8x1xf32>
    %121 = arith.divf %119, %120 : vector<8x1xf32>
    %122 = vector.broadcast %121 : vector<8x1xf32> to vector<8x32xf32>
    %123 = arith.subf %117, %122 : vector<8x32xf32>
    %124 = arith.mulf %123, %123 : vector<8x32xf32>
    %cst_51 = arith.constant dense<0.000000e+00> : vector<8xf32>
    %125 = vector.multi_reduction <add>, %124, %cst_51 [1] : vector<8x32xf32> to vector<8xf32>
    %126 = vector.shape_cast %125 : vector<8xf32> to vector<8x1xf32>
    %cst_52 = arith.constant 3.200000e+01 : f32
    %127 = vector.broadcast %cst_52 : f32 to vector<8x1xf32>
    %128 = arith.divf %126, %127 : vector<8x1xf32>
    %129 = vector.broadcast %121 : vector<8x1xf32> to vector<8x32xf32>
    %130 = arith.subf %117, %129 : vector<8x32xf32>
    %cst_53 = arith.constant 9.99999974E-6 : f32
    %131 = vector.broadcast %cst_53 : f32 to vector<8x1xf32>
    %132 = arith.addf %128, %131 : vector<8x1xf32>
    %133 = math.rsqrt %132 : vector<8x1xf32>
    %134 = vector.broadcast %133 : vector<8x1xf32> to vector<8x32xf32>
    %135 = arith.mulf %130, %134 : vector<8x32xf32>
    %136 = vector.extract_strided_slice %70 {offsets = [4, 0], sizes = [1, 32], strides = [1, 1]} : vector<6x32xf32> to vector<1x32xf32>
    %137 = vector.broadcast %136 : vector<1x32xf32> to vector<8x32xf32>
    %138 = arith.mulf %135, %137 : vector<8x32xf32>
    %139 = vector.extract_strided_slice %70 {offsets = [5, 0], sizes = [1, 32], strides = [1, 1]} : vector<6x32xf32> to vector<1x32xf32>
    %140 = vector.broadcast %139 : vector<1x32xf32> to vector<8x32xf32>
    %141 = arith.addf %138, %140 : vector<8x32xf32>
    %c0_54 = arith.constant 0 : index
    %c0_55 = arith.constant 0 : index
    %c0_56 = arith.constant 0 : index
    %142 = vector.load %arg10[%c0_54, %c0_55, %c0_56] : memref<1x8x32xf32, #tpu.memory_space<vmem>>, vector<1x8x32xf32>
    %143 = vector.shape_cast %142 : vector<1x8x32xf32> to vector<8x32xf32>
    %144 = vector.shape_cast %141 : vector<8x32xf32> to vector<1x8x32xf32>
    tpu.vector_store %arg10[%c0_54, %c0_55, %c0_56], %144 {strides = array<i32>} : memref<1x8x32xf32, #tpu.memory_space<vmem>>, vector<1x8x32xf32>,
    return
  }
  func.func @transform_0(%arg0: i32, %arg1: i32) -> (i32, i32, i32) {
    %c0_i32 = arith.constant 0 : i32
    %c0_i32_0 = arith.constant 0 : i32
    %c0_i32_1 = arith.constant 0 : i32
    return %arg0, %c0_i32, %c0_i32_0 : i32, i32, i32
  }
  func.func @transform_1(%arg0: i32, %arg1: i32) -> (i32, i32, i32) {
    %c0_i32 = arith.constant 0 : i32
    %c0_i32_0 = arith.constant 0 : i32
    %c0_i32_1 = arith.constant 0 : i32
    return %arg1, %c0_i32, %c0_i32_0 : i32, i32, i32
  }
  func.func @transform_2(%arg0: i32, %arg1: i32) -> (i32, i32, i32) {
    %c0_i32 = arith.constant 0 : i32
    %c0_i32_0 = arith.constant 0 : i32
    %c0_i32_1 = arith.constant 0 : i32
    return %arg1, %c0_i32, %c0_i32_0 : i32, i32, i32
  }
  func.func @transform_3(%arg0: i32, %arg1: i32) -> (i32, i32, i32) {
    %c0_i32 = arith.constant 0 : i32
    %c0_i32_0 = arith.constant 0 : i32
    %c0_i32_1 = arith.constant 0 : i32
    return %arg1, %c0_i32, %c0_i32_0 : i32, i32, i32
  }
  func.func @transform_4(%arg0: i32, %arg1: i32) -> (i32, i32, i32) {
    %c0_i32 = arith.constant 0 : i32
    %c0_i32_0 = arith.constant 0 : i32
    %c0_i32_1 = arith.constant 0 : i32
    return %arg1, %c0_i32, %c0_i32_0 : i32, i32, i32
  }
  func.func @transform_5(%arg0: i32, %arg1: i32) -> (i32, i32, i32) {
    %c0_i32 = arith.constant 0 : i32
    %c0_i32_0 = arith.constant 0 : i32
    %c0_i32_1 = arith.constant 0 : i32
    return %arg1, %c0_i32, %c0_i32_0 : i32, i32, i32
  }
  func.func @transform_6(%arg0: i32, %arg1: i32) -> (i32, i32, i32) {
    %c0_i32 = arith.constant 0 : i32
    %c0_i32_0 = arith.constant 0 : i32
    %c0_i32_1 = arith.constant 0 : i32
    return %arg1, %c0_i32, %c0_i32_0 : i32, i32, i32
  }
  func.func @transform_7(%arg0: i32, %arg1: i32) -> (i32, i32, i32) {
    %c0_i32 = arith.constant 0 : i32
    %c0_i32_0 = arith.constant 0 : i32
    %c0_i32_1 = arith.constant 0 : i32
    return %arg1, %c0_i32, %c0_i32_0 : i32, i32, i32
  }
  func.func @transform_8(%arg0: i32, %arg1: i32) -> (i32, i32, i32) {
    %c0_i32 = arith.constant 0 : i32
    %c0_i32_0 = arith.constant 0 : i32
    %c0_i32_1 = arith.constant 0 : i32
    return %arg0, %c0_i32, %c0_i32_0 : i32, i32, i32
  }
}

</mosaic_0001>

<llo_original>
// kernel: tpu_custom_call.1
$region0: #{tpu_custom_call.1}
  #allocation0 [shape = 'u32[]', space=smem, size = 0x4, offset = 0x4, fixed_abs, tag = 'smem constant byte address 0x4 - core index']
  #allocation1 [shape = 'u32[144,128]{1,0:T(1,128)}', space=vmem, size = 0x12000, scoped, tag = 'internal scratch']
  %s0 = inlined_call_operand.vmem [shape: f32[2,8,32], index: 0, kind: input, shape index: {}]
  %s1 = inlined_call_operand.vmem [shape: f32[2,32,96], index: 1, kind: input, shape index: {}]
  %s2 = inlined_call_operand.vmem [shape: f32[2,1,96], index: 2, kind: input, shape index: {}]
  %s3 = inlined_call_operand.vmem [shape: f32[2,32,32], index: 3, kind: input, shape index: {}]
  %s4 = inlined_call_operand.vmem [shape: f32[2,32,64], index: 4, kind: input, shape index: {}]
  %s5 = inlined_call_operand.vmem [shape: f32[2,1,64], index: 5, kind: input, shape index: {}]
  %s6 = inlined_call_operand.vmem [shape: f32[2,64,32], index: 6, kind: input, shape index: {}]
  %s7 = inlined_call_operand.vmem [shape: f32[2,6,32], index: 7, kind: input, shape index: {}]
  %s8 = inlined_call_operand.hbm [shape: f32[2,8,32], index: 8, kind: output, shape index: {}]
  %s9 = sld [smem:[#allocation0]]
  $region69: #{tpu_custom_call.1} parent=0
    _
  %s11 = ssub.s32 1, %s9
  %s12 = scalar_select 0, %s11, %s9
  $region1: #{tpu_custom_call.1} parent=0
    #allocation2 [shape = 'u8[8192]{0}', space=vmem, size = 0x2000, scoped, tag = 'output window, operand 0']
    #allocation3 [shape = 's32[2]{0}', space=sflag, size = 0x8, scoped, tag = 'scoped memory for tpu_custom_call.1']
    %13 = vsyncpa [#allocation3], 0
    %s14 = scalar_lea.sflag [#allocation3], 1
    %15 = vsyncpa %s14, 0
    loop: start=0, step=1, limit=6
    $region2: #{tpu_custom_call.1} parent=1 // loop_pre_header
      _
    $region3: #{tpu_custom_call.1} parent=1 // loop_header
      %s17 = sphi 0, %s21
      %p18 = scmp.ge.s32.totalorder %s17, 6
      %s24 = sphi 0, %s36
      %s25 = sphi 0, %s32
      %s26 = sphi 0, %s24
      %s27 = sphi 0, %s25
      %s28 = sphi 0, %s26
      %s29 = sphi 0, %s27
      %s39 = sphi 0, %s41
      %s42 = sphi 0, %s39
      %s43 = sphi 0, %s42
      %s59 = sphi 0, %s43
      %s65 = sphi 0, %s67
      %s68 = sphi 0, %s65
      %s69 = sphi 0, %s68
      %s85 = sphi 0, %s69
      %s91 = sphi 0, %s93
      %s94 = sphi 0, %s91
      %s95 = sphi 0, %s94
      %s111 = sphi 0, %s95
      %s117 = sphi 0, %s119
      %s120 = sphi 0, %s117
      %s121 = sphi 0, %s120
      %s137 = sphi 0, %s121
      %s143 = sphi 0, %s145
      %s146 = sphi 0, %s143
      %s147 = sphi 0, %s146
      %s163 = sphi 0, %s147
      %s169 = sphi 0, %s171
      %s172 = sphi 0, %s169
      %s173 = sphi 0, %s172
      %s189 = sphi 0, %s173
      %s195 = sphi 0, %s197
      %s198 = sphi 0, %s195
      %s199 = sphi 0, %s198
      %s215 = sphi 0, %s199
      %s221 = sphi 0, %s223
      %s224 = sphi 0, %s221
      %s225 = sphi 0, %s224
      %s241 = sphi 0, %s225
      %s247 = sphi 0, %s249
      %s250 = sphi 0, %s247
      %s251 = sphi 0, %s250
      %s267 = sphi 0, %s251
    $region4: #{tpu_custom_call.1} parent=1 // loop_header_branch
      %20 = sbr.rel (%p18) target = $region8
    $region5: #{tpu_custom_call.1} parent=1 // loop_body
      %s22 = ssub.s32 %s17, 1
      %s23 = ssub.s32 %s17, 2
      %s30 = sadd.s32 1, %s25
      %p31 = scmp.ge.s32.totalorder %s30, 2
      %s32 = scalar_select %p31, 0, %s30
      %s33 = sadd.s32 1, %s24
      %s34 = scalar_select %p31, %s33, %s24
      %p35 = scmp.ge.s32.totalorder %s34, 2
      %s36 = scalar_select %p35, 0, %s34
      %s37 = ssub.s32 %s24, %s36
      %p38 = scmp.eq.s32.totalorder %s37, 0
      %s40 = sadd.s32 %s39, 1
      %s41 = scalar_select %p38, %s39, %s40
      %p44 = pneg %p38
      %p45 = scmp.eq.s32.totalorder %s17, 3
      %p46 = por %p44, %p45
      %p47 = scmp.ne.s32.totalorder %s39, %s42
      %p48 = scmp.eq.s32.totalorder %s17, 0
      %p49 = por %p47, %p48
      %p50 = scmp.ne.s32.totalorder %s39, %s42
      %p51 = scmp.eq.s32.totalorder %s22, 3
      %p52 = por %p50, %p51
      %p53 = scmp.ne.s32.totalorder %s42, %s43
      %p54 = scmp.eq.s32.totalorder %s22, 0
      %p55 = por %p53, %p54
      %p56 = scmp.ne.s32.totalorder %s42, %s43
      %p57 = scmp.eq.s32.totalorder %s23, 3
      %p58 = por %p56, %p57
      %p60 = scmp.ne.s32.totalorder %s43, %s59
      %p61 = scmp.eq.s32.totalorder %s23, 0
      %p62 = por %p60, %p61
      %s63 = ssub.s32 %s25, %s32
      %p64 = scmp.eq.s32.totalorder %s63, 0
      %s66 = sadd.s32 %s65, 1
      %s67 = scalar_select %p64, %s65, %s66
      %p70 = pneg %p64
      %p71 = scmp.eq.s32.totalorder %s17, 3
      %p72 = por %p70, %p71
      %p73 = scmp.ne.s32.totalorder %s65, %s68
      %p74 = scmp.eq.s32.totalorder %s17, 0
      %p75 = por %p73, %p74
      %p76 = scmp.ne.s32.totalorder %s65, %s68
      %p77 = scmp.eq.s32.totalorder %s22, 3
      %p78 = por %p76, %p77
      %p79 = scmp.ne.s32.totalorder %s68, %s69
      %p80 = scmp.eq.s32.totalorder %s22, 0
      %p81 = por %p79, %p80
      %p82 = scmp.ne.s32.totalorder %s68, %s69
      %p83 = scmp.eq.s32.totalorder %s23, 3
      %p84 = por %p82, %p83
      %p86 = scmp.ne.s32.totalorder %s69, %s85
      %p87 = scmp.eq.s32.totalorder %s23, 0
      %p88 = por %p86, %p87
      %s89 = ssub.s32 %s25, %s32
      %p90 = scmp.eq.s32.totalorder %s89, 0
      %s92 = sadd.s32 %s91, 1
      %s93 = scalar_select %p90, %s91, %s92
      %p96 = pneg %p90
      %p97 = scmp.eq.s32.totalorder %s17, 3
      %p98 = por %p96, %p97
      %p99 = scmp.ne.s32.totalorder %s91, %s94
      %p100 = scmp.eq.s32.totalorder %s17, 0
      %p101 = por %p99, %p100
      %p102 = scmp.ne.s32.totalorder %s91, %s94
      %p103 = scmp.eq.s32.totalorder %s22, 3
      %p104 = por %p102, %p103
      %p105 = scmp.ne.s32.totalorder %s94, %s95
      %p106 = scmp.eq.s32.totalorder %s22, 0
      %p107 = por %p105, %p106
      %p108 = scmp.ne.s32.totalorder %s94, %s95
      %p109 = scmp.eq.s32.totalorder %s23, 3
      %p110 = por %p108, %p109
      %p112 = scmp.ne.s32.totalorder %s95, %s111
      %p113 = scmp.eq.s32.totalorder %s23, 0
      %p114 = por %p112, %p113
      %s115 = ssub.s32 %s25, %s32
      %p116 = scmp.eq.s32.totalorder %s115, 0
      %s118 = sadd.s32 %s117, 1
      %s119 = scalar_select %p116, %s117, %s118
      %p122 = pneg %p116
      %p123 = scmp.eq.s32.totalorder %s17, 3
      %p124 = por %p122, %p123
      %p125 = scmp.ne.s32.totalorder %s117, %s120
      %p126 = scmp.eq.s32.totalorder %s17, 0
      %p127 = por %p125, %p126
      %p128 = scmp.ne.s32.totalorder %s117, %s120
      %p129 = scmp.eq.s32.totalorder %s22, 3
      %p130 = por %p128, %p129
      %p131 = scmp.ne.s32.totalorder %s120, %s121
      %p132 = scmp.eq.s32.totalorder %s22, 0
      %p133 = por %p131, %p132
      %p134 = scmp.ne.s32.totalorder %s120, %s121
      %p135 = scmp.eq.s32.totalorder %s23, 3
      %p136 = por %p134, %p135
      %p138 = scmp.ne.s32.totalorder %s121, %s137
      %p139 = scmp.eq.s32.totalorder %s23, 0
      %p140 = por %p138, %p139
      %s141 = ssub.s32 %s25, %s32
      %p142 = scmp.eq.s32.totalorder %s141, 0
      %s144 = sadd.s32 %s143, 1
      %s145 = scalar_select %p142, %s143, %s144
      %p148 = pneg %p142
      %p149 = scmp.eq.s32.totalorder %s17, 3
      %p150 = por %p148, %p149
      %p151 = scmp.ne.s32.totalorder %s143, %s146
      %p152 = scmp.eq.s32.totalorder %s17, 0
      %p153 = por %p151, %p152
      %p154 = scmp.ne.s32.totalorder %s143, %s146
      %p155 = scmp.eq.s32.totalorder %s22, 3
      %p156 = por %p154, %p155
      %p157 = scmp.ne.s32.totalorder %s146, %s147
      %p158 = scmp.eq.s32.totalorder %s22, 0
      %p159 = por %p157, %p158
      %p160 = scmp.ne.s32.totalorder %s146, %s147
      %p161 = scmp.eq.s32.totalorder %s23, 3
      %p162 = por %p160, %p161
      %p164 = scmp.ne.s32.totalorder %s147, %s163
      %p165 = scmp.eq.s32.totalorder %s23, 0
      %p166 = por %p164, %p165
      %s167 = ssub.s32 %s25, %s32
      %p168 = scmp.eq.s32.totalorder %s167, 0
      %s170 = sadd.s32 %s169, 1
      %s171 = scalar_select %p168, %s169, %s170
      %p174 = pneg %p168
      %p175 = scmp.eq.s32.totalorder %s17, 3
      %p176 = por %p174, %p175
      %p177 = scmp.ne.s32.totalorder %s169, %s172
      %p178 = scmp.eq.s32.totalorder %s17, 0
      %p179 = por %p177, %p178
      %p180 = scmp.ne.s32.totalorder %s169, %s172
      %p181 = scmp.eq.s32.totalorder %s22, 3
      %p182 = por %p180, %p181
      %p183 = scmp.ne.s32.totalorder %s172, %s173
      %p184 = scmp.eq.s32.totalorder %s22, 0
      %p185 = por %p183, %p184
      %p186 = scmp.ne.s32.totalorder %s172, %s173
      %p187 = scmp.eq.s32.totalorder %s23, 3
      %p188 = por %p186, %p187
      %p190 = scmp.ne.s32.totalorder %s173, %s189
      %p191 = scmp.eq.s32.totalorder %s23, 0
      %p192 = por %p190, %p191
      %s193 = ssub.s32 %s25, %s32
      %p194 = scmp.eq.s32.totalorder %s193, 0
      %s196 = sadd.s32 %s195, 1
      %s197 = scalar_select %p194, %s195, %s196
      %p200 = pneg %p194
      %p201 = scmp.eq.s32.totalorder %s17, 3
      %p202 = por %p200, %p201
      %p203 = scmp.ne.s32.totalorder %s195, %s198
      %p204 = scmp.eq.s32.totalorder %s17, 0
      %p205 = por %p203, %p204
      %p206 = scmp.ne.s32.totalorder %s195, %s198
      %p207 = scmp.eq.s32.totalorder %s22, 3
      %p208 = por %p206, %p207
      %p209 = scmp.ne.s32.totalorder %s198, %s199
      %p210 = scmp.eq.s32.totalorder %s22, 0
      %p211 = por %p209, %p210
      %p212 = scmp.ne.s32.totalorder %s198, %s199
      %p213 = scmp.eq.s32.totalorder %s23, 3
      %p214 = por %p212, %p213
      %p216 = scmp.ne.s32.totalorder %s199, %s215
      %p217 = scmp.eq.s32.totalorder %s23, 0
      %p218 = por %p216, %p217
      %s219 = ssub.s32 %s25, %s32
      %p220 = scmp.eq.s32.totalorder %s219, 0
      %s222 = sadd.s32 %s221, 1
      %s223 = scalar_select %p220, %s221, %s222
      %p226 = pneg %p220
      %p227 = scmp.eq.s32.totalorder %s17, 3
      %p228 = por %p226, %p227
      %p229 = scmp.ne.s32.totalorder %s221, %s224
      %p230 = scmp.eq.s32.totalorder %s17, 0
      %p231 = por %p229, %p230
      %p232 = scmp.ne.s32.totalorder %s221, %s224
      %p233 = scmp.eq.s32.totalorder %s22, 3
      %p234 = por %p232, %p233
      %p235 = scmp.ne.s32.totalorder %s224, %s225
      %p236 = scmp.eq.s32.totalorder %s22, 0
      %p237 = por %p235, %p236
      %p238 = scmp.ne.s32.totalorder %s224, %s225
      %p239 = scmp.eq.s32.totalorder %s23, 3
      %p240 = por %p238, %p239
      %p242 = scmp.ne.s32.totalorder %s225, %s241
      %p243 = scmp.eq.s32.totalorder %s23, 0
      %p244 = por %p242, %p243
      %s245 = ssub.s32 %s24, %s36
      %p246 = scmp.eq.s32.totalorder %s245, 0
      %s248 = sadd.s32 %s247, 1
      %s249 = scalar_select %p246, %s247, %s248
      %p252 = pneg %p246
      %p253 = scmp.eq.s32.totalorder %s17, 3
      %p254 = por %p252, %p253
      %p255 = scmp.ne.s32.totalorder %s247, %s250
      %p256 = scmp.eq.s32.totalorder %s17, 0
      %p257 = por %p255, %p256
      %p258 = scmp.ne.s32.totalorder %s247, %s250
      %p259 = scmp.eq.s32.totalorder %s22, 3
      %p260 = por %p258, %p259
      %p261 = scmp.ne.s32.totalorder %s250, %s251
      %p262 = scmp.eq.s32.totalorder %s22, 0
      %p263 = por %p261, %p262
      %p264 = scmp.ne.s32.totalorder %s250, %s251
      %p265 = scmp.eq.s32.totalorder %s23, 3
      %p266 = por %p264, %p265
      %p268 = scmp.ne.s32.totalorder %s251, %s267
      %p269 = scmp.eq.s32.totalorder %s23, 0
      %p270 = por %p268, %p269
      %p271 = scmp.le.s32.totalorder 1, %s17
      %p272 = scmp.lt.s32.totalorder %s17, 5
      %p273 = pnand %p271, %p272
      %p274 = pneg %p273
      // Predicated region
      $region9: #{tpu_custom_call.1} parent=5 // pred_check
        _
      $region10: #{tpu_custom_call.1} parent=5 // pred_check_branch
        %276 = sbr.rel (%p273) target = $region12
      $region11: #{tpu_custom_call.1} parent=5 // pred_region
        %s277 = ssub.s32 %s17, 1
      $region12: #{tpu_custom_call.1} parent=5 // pred_fallthru
        _
      %p278 = scmp.lt.s32.totalorder %s17, 4
      // Predicated region
      $region13: #{tpu_custom_call.1} parent=5 // pred_check
        %p279 = pneg %p278
      $region14: #{tpu_custom_call.1} parent=5 // pred_check_branch
        %281 = sbr.rel (%p279) target = $region16
      $region15: #{tpu_custom_call.1} parent=5 // pred_region
        // Predicated region
        $region17: #{tpu_custom_call.1} parent=15 // pred_check
          %p282 = pneg %p49
        $region18: #{tpu_custom_call.1} parent=15 // pred_check_branch
          %284 = sbr.rel (%p282) target = $region20
        $region19: #{tpu_custom_call.1} parent=15 // pred_region
          %p285 = scmp.lt.s32.totalorder %s24, 1
          %s286 = scalar_select %p285, %s24, 1
          %s287 = smul.addr %s286, 8
          %s288 = scalar_lea.vmem %s0, %s287
        $region20: #{tpu_custom_call.1} parent=15 // pred_fallthru
          _
        // Predicated region
        $region21: #{tpu_custom_call.1} parent=15 // pred_check
          %p289 = pneg %p75
        $region22: #{tpu_custom_call.1} parent=15 // pred_check_branch
          %291 = sbr.rel (%p289) target = $region24
        $region23: #{tpu_custom_call.1} parent=15 // pred_region
          %p292 = scmp.lt.s32.totalorder %s25, 1
          %s293 = scalar_select %p292, %s25, 1
          %s294 = smul.addr %s293, 4
          %s295 = smul.addr %s294, 8
          %s296 = scalar_lea.vmem %s1, %s295
        $region24: #{tpu_custom_call.1} parent=15 // pred_fallthru
          _
        // Predicated region
        $region25: #{tpu_custom_call.1} parent=15 // pred_check
          %p297 = pneg %p101
        $region26: #{tpu_custom_call.1} parent=15 // pred_check_branch
          %299 = sbr.rel (%p297) target = $region28
        $region27: #{tpu_custom_call.1} parent=15 // pred_region
          %p300 = scmp.lt.s32.totalorder %s25, 1
          %s301 = scalar_select %p300, %s25, 1
          %s302 = scalar_lea.vmem %s2, %s301
        $region28: #{tpu_custom_call.1} parent=15 // pred_fallthru
          _
        // Predicated region
        $region29: #{tpu_custom_call.1} parent=15 // pred_check
          %p303 = pneg %p127
        $region30: #{tpu_custom_call.1} parent=15 // pred_check_branch
          %305 = sbr.rel (%p303) target = $region32
        $region31: #{tpu_custom_call.1} parent=15 // pred_region
          %p306 = scmp.lt.s32.totalorder %s25, 1
          %s307 = scalar_select %p306, %s25, 1
          %s308 = smul.addr %s307, 4
          %s309 = smul.addr %s308, 8
          %s310 = scalar_lea.vmem %s3, %s309
        $region32: #{tpu_custom_call.1} parent=15 // pred_fallthru
          _
        // Predicated region
        $region33: #{tpu_custom_call.1} parent=15 // pred_check
          %p311 = pneg %p153
        $region34: #{tpu_custom_call.1} parent=15 // pred_check_branch
          %313 = sbr.rel (%p311) target = $region36
        $region35: #{tpu_custom_call.1} parent=15 // pred_region
          %p314 = scmp.lt.s32.totalorder %s25, 1
          %s315 = scalar_select %p314, %s25, 1
          %s316 = smul.addr %s315, 4
          %s317 = smul.addr %s316, 8
          %s318 = scalar_lea.vmem %s4, %s317
        $region36: #{tpu_custom_call.1} parent=15 // pred_fallthru
          _
        // Predicated region
        $region37: #{tpu_custom_call.1} parent=15 // pred_check
          %p319 = pneg %p179
        $region38: #{tpu_custom_call.1} parent=15 // pred_check_branch
          %321 = sbr.rel (%p319) target = $region40
        $region39: #{tpu_custom_call.1} parent=15 // pred_region
          %p322 = scmp.lt.s32.totalorder %s25, 1
          %s323 = scalar_select %p322, %s25, 1
          %s324 = scalar_lea.vmem %s5, %s323
        $region40: #{tpu_custom_call.1} parent=15 // pred_fallthru
          _
        // Predicated region
        $region41: #{tpu_custom_call.1} parent=15 // pred_check
          %p325 = pneg %p205
        $region42: #{tpu_custom_call.1} parent=15 // pred_check_branch
          %327 = sbr.rel (%p325) target = $region44
        $region43: #{tpu_custom_call.1} parent=15 // pred_region
          %p328 = scmp.lt.s32.totalorder %s25, 1
          %s329 = scalar_select %p328, %s25, 1
          %s330 = smul.addr %s329, 8
          %s331 = smul.addr %s330, 8
          %s332 = scalar_lea.vmem %s6, %s331
        $region44: #{tpu_custom_call.1} parent=15 // pred_fallthru
          _
        // Predicated region
        $region45: #{tpu_custom_call.1} parent=15 // pred_check
          %p333 = pneg %p231
        $region46: #{tpu_custom_call.1} parent=15 // pred_check_branch
          %335 = sbr.rel (%p333) target = $region48
        $region47: #{tpu_custom_call.1} parent=15 // pred_region
          %p336 = scmp.lt.s32.totalorder %s25, 1
          %s337 = scalar_select %p336, %s25, 1
          %s338 = smul.addr %s337, 8
          %s339 = scalar_lea.vmem %s7, %s338
        $region48: #{tpu_custom_call.1} parent=15 // pred_fallthru
          _
      $region16: #{tpu_custom_call.1} parent=5 // pred_fallthru
        _
      %p340 = scmp.le.s32.totalorder 1, %s17
      %p341 = scmp.lt.s32.totalorder %s17, 5
      %p342 = pnand %p340, %p341
      %p343 = pneg %p342
      // Predicated region
      $region49: #{tpu_custom_call.1} parent=5 // pred_check
        _
      $region50: #{tpu_custom_call.1} parent=5 // pred_check_branch
        %345 = sbr.rel (%p342) target = $region52
      $region51: #{tpu_custom_call.1} parent=5 // pred_region
        %s346 = ssub.s32 %s17, 1
        %p347 = scmp.lt.s32.totalorder %s26, 1
        %s348 = scalar_select %p347, %s26, 1
        %s349 = smul.addr %s348, 8
        %s350 = scalar_lea.vmem %s0, %s349
        %p351 = pneg %p55
        %p352 = pneg %p52
        %p353 = scmp.lt.s32.totalorder %s27, 1
        %s354 = scalar_select %p353, %s27, 1
        %s355 = smul.addr %s354, 4
        %s356 = smul.addr %s355, 8
        %s357 = scalar_lea.vmem %s1, %s356
        %p358 = pneg %p81
        %p359 = pneg %p78
        %p360 = scmp.lt.s32.totalorder %s27, 1
        %s361 = scalar_select %p360, %s27, 1
        %s362 = scalar_lea.vmem %s2, %s361
        %p363 = pneg %p107
        %p364 = pneg %p104
        %p365 = scmp.lt.s32.totalorder %s27, 1
        %s366 = scalar_select %p365, %s27, 1
        %s367 = smul.addr %s366, 4
        %s368 = smul.addr %s367, 8
        %s369 = scalar_lea.vmem %s3, %s368
        %p370 = pneg %p133
        %p371 = pneg %p130
        %p372 = scmp.lt.s32.totalorder %s27, 1
        %s373 = scalar_select %p372, %s27, 1
        %s374 = smul.addr %s373, 4
        %s375 = smul.addr %s374, 8
        %s376 = scalar_lea.vmem %s4, %s375
        %p377 = pneg %p159
        %p378 = pneg %p156
        %p379 = scmp.lt.s32.totalorder %s27, 1
        %s380 = scalar_select %p379, %s27, 1
        %s381 = scalar_lea.vmem %s5, %s380
        %p382 = pneg %p185
        %p383 = pneg %p182
        %p384 = scmp.lt.s32.totalorder %s27, 1
        %s385 = scalar_select %p384, %s27, 1
        %s386 = smul.addr %s385, 8
        %s387 = smul.addr %s386, 8
        %s388 = scalar_lea.vmem %s6, %s387
        %p389 = pneg %p211
        %p390 = pneg %p208
        %p391 = scmp.lt.s32.totalorder %s27, 1
        %s392 = scalar_select %p391, %s27, 1
        %s393 = smul.addr %s392, 8
        %s394 = scalar_lea.vmem %s7, %s393
        %p395 = pneg %p237
        %p396 = pneg %p234
        %p397 = pneg %p263
        %p398 = pneg %p260
        %s399 = sand.u32 %s250, 1
        %s400 = scalar_lea.sflag [#allocation3], %s399
        %s401 = sand.u32 %s250, 1
        %s402 = smul.addr %s401, 8
        %s403 = scalar_lea.vmem [#allocation2], %s402
        %p404 = scmp.lt.s32.totalorder %s26, 1
        %s405 = scalar_select %p404, %s26, 1
        %s406 = smul.addr %s405, 8
        %s407 = scalar_lea.vmem %s0, %s406
        %p408 = scmp.lt.s32.totalorder %s27, 1
        %s409 = scalar_select %p408, %s27, 1
        %s410 = smul.addr %s409, 4
        %s411 = smul.addr %s410, 8
        %s412 = scalar_lea.vmem %s1, %s411
        %p413 = scmp.lt.s32.totalorder %s27, 1
        %s414 = scalar_select %p413, %s27, 1
        %s415 = scalar_lea.vmem %s2, %s414
        %p416 = scmp.lt.s32.totalorder %s27, 1
        %s417 = scalar_select %p416, %s27, 1
        %s418 = smul.addr %s417, 4
        %s419 = smul.addr %s418, 8
        %s420 = scalar_lea.vmem %s3, %s419
        %p421 = scmp.lt.s32.totalorder %s27, 1
        %s422 = scalar_select %p421, %s27, 1
        %s423 = smul.addr %s422, 4
        %s424 = smul.addr %s423, 8
        %s425 = scalar_lea.vmem %s4, %s424
        %p426 = scmp.lt.s32.totalorder %s27, 1
        %s427 = scalar_select %p426, %s27, 1
        %s428 = scalar_lea.vmem %s5, %s427
        %p429 = scmp.lt.s32.totalorder %s27, 1
        %s430 = scalar_select %p429, %s27, 1
        %s431 = smul.addr %s430, 8
        %s432 = smul.addr %s431, 8
        %s433 = scalar_lea.vmem %s6, %s432
        %p434 = scmp.lt.s32.totalorder %s27, 1
        %s435 = scalar_select %p434, %s27, 1
        %s436 = smul.addr %s435, 8
        %s437 = scalar_lea.vmem %s7, %s436
        %p438 = scmp.eq.s32.totalorder %s27, 0
        // Predicated region
        $region53: #{tpu_custom_call.1} parent=51 // pred_check
          %p439 = pneg %p438
        $region54: #{tpu_custom_call.1} parent=51 // pred_check_branch
          %441 = sbr.rel (%p439) target = $region56
        $region55: #{tpu_custom_call.1} parent=51 // pred_region
          %v442 = vld [vmem:[%s407] sm:$0xff]
          %vm443 = vcmask 261120
          %444 = vst.msk [vmem:[%s403] sm:$0xff] %vm443, %v442
        $region56: #{tpu_custom_call.1} parent=51 // pred_fallthru
          _
        %v445 = vld [vmem:[%s403] sm:$0xff]
        %v446 = vld [vmem:[%s412] sm:$0xff]
        %v447 = vld [vmem:[%s412 + $0x8] sm:$0xff]
        %v448 = vld [vmem:[%s412 + $0x10] sm:$0xff]
        %v449 = vld [vmem:[%s412 + $0x18] sm:$0xff]
        %v450 = vld [vmem:[%s415] sm:$0x1]
        %v452 = vlaneseq
        %v453 = vshrl.u32 %v452, 7
        %v454 = vsub.s32 0, %v453
        %v455 = vrot.slane %v450, %v454
        %vm457 = vcmask 261120
        %v459 = vsel %vm457, %v445, 0
        %461 = vmatprep.subr.mxu0 0.0
        %462 = vmatpush1.msra.mxu0 %v446
        %463 = vmatprep.subr.mxu0 0.0
        %464 = vmatpush1.msra.mxu0 %v447
        %465 = vmatprep.subr.mxu0 0.0
        %466 = vmatpush1.msra.mxu0 %v448
        %467 = vmatprep.subr.mxu0 0.0
        %468 = vmatpush1.msra.mxu0 %v449
        %469 = vmatprep.subr.mxu0 0.0
        %470 = vmatpush1.msra.mxu0 0.0
        %471 = vmatprep.subr.mxu0 0.0
        %472 = vmatpush1.msra.mxu0 0.0
        %473 = vmatprep.subr.mxu0 0.0
        %474 = vmatpush1.msra.mxu0 0.0
        %475 = vmatprep.subr.mxu0 0.0
        %476 = vmatpush1.msra.mxu0 0.0
        %477 = vmatprep.subr.mxu0 0.0
        %478 = vmatpush1.msra.mxu0 0.0
        %479 = vmatprep.subr.mxu0 0.0
        %480 = vmatpush1.msra.mxu0 0.0
        %481 = vmatprep.subr.mxu0 0.0
        %482 = vmatpush1.msra.mxu0 0.0
        %483 = vmatprep.subr.mxu0 0.0
        %484 = vmatpush1.msra.mxu0 0.0
        %485 = vmatprep.subr.mxu0 0.0
        %486 = vmatpush1.msra.mxu0 0.0
        %487 = vmatprep.subr.mxu0 0.0
        %488 = vmatpush1.msra.mxu0 0.0
        %489 = vmatprep.subr.mxu0 0.0
        %490 = vmatpush1.msra.mxu0 0.0
        %491 = vmatprep.subr.mxu0 0.0
        %492 = vmatpush1.msra.mxu0 0.0
        %493 = vmatprep.subr.mxu0 0.0
        %494 = vmatpush1.msra.mxu0 0.0
        %495 = vmatprep.subr.mxu0 0.0
        %496 = vmatpush1.msra.mxu0 0.0
        %497 = vmatprep.subr.mxu0 0.0
        %498 = vmatpush1.msra.mxu0 0.0
        %499 = vmatprep.subr.mxu0 0.0
        %500 = vmatpush1.msra.mxu0 0.0
        %501 = vmatprep.subr.mxu0 0.0
        %502 = vmatpush1.msra.mxu0 0.0
        %503 = vmatprep.subr.mxu0 0.0
        %504 = vmatpush1.msra.mxu0 0.0
        %505 = vmatprep.subr.mxu0 0.0
        %506 = vmatpush1.msra.mxu0 0.0
        %507 = vmatprep.subr.mxu0 0.0
        %508 = vmatpush1.msra.mxu0 0.0
        %509 = vmatprep.subr.mxu0 0.0
        %510 = vmatpush1.msra.mxu0 0.0
        %511 = vmatprep.subr.mxu0 0.0
        %512 = vmatpush1.msra.mxu0 0.0
        %513 = vmatprep.subr.mxu0 0.0
        %514 = vmatpush1.msra.mxu0 0.0
        %515 = vmatprep.subr.mxu0 0.0
        %516 = vmatpush1.msra.mxu0 0.0
        %517 = vmatprep.subr.mxu0 0.0
        %518 = vmatpush1.msra.mxu0 0.0
        %519 = vmatprep.subr.mxu0 0.0
        %520 = vmatpush1.msra.mxu0 0.0
        %521 = vmatprep.subr.mxu0 0.0
        %522 = vmatpush1.msra.mxu0 0.0
        %523 = vmatprep.subr.mxu0 0.0
        %524 = vmatpush1.msra.mxu0 0.0
        %525 = vmatprep.mubr.f32.mxu0 0.0
        %526 = vmatmul.mubr.f32.gmra.mrb[0].mxu0 %v459
        %v527 = vpop.f32.mrb[0].mxu0
        %v528 = vadd.f32 %v455, %v527
        %v529 = vpop.f32.mrb[0].mxu0
        %530 = vdwg.mxu0
        %532 = vrot.lane.b32.xlu0 %v528, 96
        %v533 = vpop.permute.xlu0 %532
        %vm534 = vcmask 64512
        %v535 = vsel %vm534, %v528, 0
        %v537 = vsel %vm534, %v533, 0
        %539 = vmatprep.subr.mxu0 0.0
        %540 = vmatpush1.xpose.msra.mxu0 %v537
        %541 = vmatprep.subr.mxu0 0.0
        %542 = vmatpush1.xpose.msra.mxu0 0.0
        %543 = vmatprep.subr.mxu0 0.0
        %544 = vmatpush1.xpose.msra.mxu0 0.0
        %545 = vmatprep.subr.mxu0 0.0
        %546 = vmatpush1.xpose.msra.mxu0 0.0
        %547 = vmatprep.subr.mxu0 0.0
        %548 = vmatpush1.xpose.msra.mxu0 0.0
        %549 = vmatprep.subr.mxu0 0.0
        %550 = vmatpush1.xpose.msra.mxu0 0.0
        %551 = vmatprep.subr.mxu0 0.0
        %552 = vmatpush1.xpose.msra.mxu0 0.0
        %553 = vmatprep.subr.mxu0 0.0
        %554 = vmatpush1.xpose.msra.mxu0 0.0
        %555 = vmatprep.subr.mxu0 0.0
        %556 = vmatpush1.xpose.msra.mxu0 0.0
        %557 = vmatprep.subr.mxu0 0.0
        %558 = vmatpush1.xpose.msra.mxu0 0.0
        %559 = vmatprep.subr.mxu0 0.0
        %560 = vmatpush1.xpose.msra.mxu0 0.0
        %561 = vmatprep.subr.mxu0 0.0
        %562 = vmatpush1.xpose.msra.mxu0 0.0
        %563 = vmatprep.subr.mxu0 0.0
        %564 = vmatpush1.xpose.msra.mxu0 0.0
        %565 = vmatprep.subr.mxu0 0.0
        %566 = vmatpush1.xpose.msra.mxu0 0.0
        %567 = vmatprep.subr.mxu0 0.0
        %568 = vmatpush1.xpose.msra.mxu0 0.0
        %569 = vmatprep.subr.mxu0 0.0
        %570 = vmatpush1.xpose.msra.mxu0 0.0
        %571 = vmatprep.subr.mxu0 0.0
        %572 = vmatpush1.xpose.msra.mxu0 0.0
        %573 = vmatprep.subr.mxu0 0.0
        %574 = vmatpush1.xpose.msra.mxu0 0.0
        %575 = vmatprep.subr.mxu0 0.0
        %576 = vmatpush1.xpose.msra.mxu0 0.0
        %577 = vmatprep.subr.mxu0 0.0
        %578 = vmatpush1.xpose.msra.mxu0 0.0
        %579 = vmatprep.subr.mxu0 0.0
        %580 = vmatpush1.xpose.msra.mxu0 0.0
        %581 = vmatprep.subr.mxu0 0.0
        %582 = vmatpush1.xpose.msra.mxu0 0.0
        %583 = vmatprep.subr.mxu0 0.0
        %584 = vmatpush1.xpose.msra.mxu0 0.0
        %585 = vmatprep.subr.mxu0 0.0
        %586 = vmatpush1.xpose.msra.mxu0 0.0
        %587 = vmatprep.subr.mxu0 0.0
        %588 = vmatpush1.xpose.msra.mxu0 0.0
        %589 = vmatprep.subr.mxu0 0.0
        %590 = vmatpush1.xpose.msra.mxu0 0.0
        %591 = vmatprep.subr.mxu0 0.0
        %592 = vmatpush1.xpose.msra.mxu0 0.0
        %593 = vmatprep.subr.mxu0 0.0
        %594 = vmatpush1.xpose.msra.mxu0 0.0
        %595 = vmatprep.subr.mxu0 0.0
        %596 = vmatpush1.xpose.msra.mxu0 0.0
        %597 = vmatprep.subr.mxu0 0.0
        %598 = vmatpush1.xpose.msra.mxu0 0.0
        %599 = vmatprep.subr.mxu0 0.0
        %600 = vmatpush1.xpose.msra.mxu0 0.0
        %601 = vmatprep.subr.mxu0 0.0
        %602 = vmatpush1.xpose.msra.mxu0 0.0
        %603 = vmatprep.mubr.f32.mxu0 0.0
        %604 = vmatmul.mubr.f32.gmra.mrb[0].mxu0 %v535
        %v605 = vpop.f32.mrb[0].mxu0
        %v606 = vadd.f32 0.0, %v605
        %v607 = vpop.f32.mrb[0].mxu0
        %608 = vdwg.mxu0
        %v609 = vsel %vm534, %v606, -inf
        %610 = vmax.xlane.f32.xlu0 %v609
        %v611 = vpop.xlane.xlu0 %610
        %v612 = vsub.f32 %v606, %v611
        %v613 = vmul.f32 %v612, 1.442695
        %v614 = vpow.pop %v613
        %v615 = vsel %vm534, %v614, 0.0
        %616 = vadd.xlane.f32.xlu0 %v615
        %v617 = vpop.xlane.xlu0 %616
        %v618 = vrcp.pop %v617
        %v619 = vmul.f32 %v614, %v618
        %620 = vrot.lane.b32.xlu0 %v528, 64
        %v621 = vpop.permute.xlu0 %620
        %v624 = vsel %vm534, %v619, 0
        %626 = vmatprep.subr.mxu0 0.0
        %627 = vmatpush1.msra.mxu0 %v621
        %628 = vmatprep.subr.mxu0 0.0
        %629 = vmatpush1.msra.mxu0 0.0
        %630 = vmatprep.subr.mxu0 0.0
        %631 = vmatpush1.msra.mxu0 0.0
        %632 = vmatprep.subr.mxu0 0.0
        %633 = vmatpush1.msra.mxu0 0.0
        %634 = vmatprep.subr.mxu0 0.0
        %635 = vmatpush1.msra.mxu0 0.0
        %636 = vmatprep.subr.mxu0 0.0
        %637 = vmatpush1.msra.mxu0 0.0
        %638 = vmatprep.subr.mxu0 0.0
        %639 = vmatpush1.msra.mxu0 0.0
        %640 = vmatprep.subr.mxu0 0.0
        %641 = vmatpush1.msra.mxu0 0.0
        %642 = vmatprep.subr.mxu0 0.0
        %643 = vmatpush1.msra.mxu0 0.0
        %644 = vmatprep.subr.mxu0 0.0
        %645 = vmatpush1.msra.mxu0 0.0
        %646 = vmatprep.subr.mxu0 0.0
        %647 = vmatpush1.msra.mxu0 0.0
        %648 = vmatprep.subr.mxu0 0.0
        %649 = vmatpush1.msra.mxu0 0.0
        %650 = vmatprep.subr.mxu0 0.0
        %651 = vmatpush1.msra.mxu0 0.0
        %652 = vmatprep.subr.mxu0 0.0
        %653 = vmatpush1.msra.mxu0 0.0
        %654 = vmatprep.subr.mxu0 0.0
        %655 = vmatpush1.msra.mxu0 0.0
        %656 = vmatprep.subr.mxu0 0.0
        %657 = vmatpush1.msra.mxu0 0.0
        %658 = vmatprep.subr.mxu0 0.0
        %659 = vmatpush1.msra.mxu0 0.0
        %660 = vmatprep.subr.mxu0 0.0
        %661 = vmatpush1.msra.mxu0 0.0
        %662 = vmatprep.subr.mxu0 0.0
        %663 = vmatpush1.msra.mxu0 0.0
        %664 = vmatprep.subr.mxu0 0.0
        %665 = vmatpush1.msra.mxu0 0.0
        %666 = vmatprep.subr.mxu0 0.0
        %667 = vmatpush1.msra.mxu0 0.0
        %668 = vmatprep.subr.mxu0 0.0
        %669 = vmatpush1.msra.mxu0 0.0
        %670 = vmatprep.subr.mxu0 0.0
        %671 = vmatpush1.msra.mxu0 0.0
        %672 = vmatprep.subr.mxu0 0.0
        %673 = vmatpush1.msra.mxu0 0.0
        %674 = vmatprep.subr.mxu0 0.0
        %675 = vmatpush1.msra.mxu0 0.0
        %676 = vmatprep.subr.mxu0 0.0
        %677 = vmatpush1.msra.mxu0 0.0
        %678 = vmatprep.subr.mxu0 0.0
        %679 = vmatpush1.msra.mxu0 0.0
        %680 = vmatprep.subr.mxu0 0.0
        %681 = vmatpush1.msra.mxu0 0.0
        %682 = vmatprep.subr.mxu0 0.0
        %683 = vmatpush1.msra.mxu0 0.0
        %684 = vmatprep.subr.mxu0 0.0
        %685 = vmatpush1.msra.mxu0 0.0
        %686 = vmatprep.subr.mxu0 0.0
        %687 = vmatpush1.msra.mxu0 0.0
        %688 = vmatprep.subr.mxu0 0.0
        %689 = vmatpush1.msra.mxu0 0.0
        %690 = vmatprep.mubr.f32.mxu0 0.0
        %691 = vmatmul.mubr.f32.gmra.mrb[0].mxu0 %v624
        %v692 = vpop.f32.mrb[0].mxu0
        %v693 = vadd.f32 0.0, %v692
        %v694 = vpop.f32.mrb[0].mxu0
        %695 = vdwg.mxu0
        %696 = vrot.lane.b32.xlu0 %v528, 120
        %v697 = vpop.permute.xlu0 %696
        %698 = vrot.lane.b32.xlu0 %v528, 88
        %v699 = vpop.permute.xlu0 %698
        %v700 = vsel %vm534, %v697, 0
        %v702 = vsel %vm534, %v699, 0
        %704 = vmatprep.subr.mxu0 0.0
        %705 = vmatpush1.xpose.msra.mxu0 %v702
        %706 = vmatprep.subr.mxu0 0.0
        %707 = vmatpush1.xpose.msra.mxu0 0.0
        %708 = vmatprep.subr.mxu0 0.0
        %709 = vmatpush1.xpose.msra.mxu0 0.0
        %710 = vmatprep.subr.mxu0 0.0
        %711 = vmatpush1.xpose.msra.mxu0 0.0
        %712 = vmatprep.subr.mxu0 0.0
        %713 = vmatpush1.xpose.msra.mxu0 0.0
        %714 = vmatprep.subr.mxu0 0.0
        %715 = vmatpush1.xpose.msra.mxu0 0.0
        %716 = vmatprep.subr.mxu0 0.0
        %717 = vmatpush1.xpose.msra.mxu0 0.0
        %718 = vmatprep.subr.mxu0 0.0
        %719 = vmatpush1.xpose.msra.mxu0 0.0
        %720 = vmatprep.subr.mxu0 0.0
        %721 = vmatpush1.xpose.msra.mxu0 0.0
        %722 = vmatprep.subr.mxu0 0.0
        %723 = vmatpush1.xpose.msra.mxu0 0.0
        %724 = vmatprep.subr.mxu0 0.0
        %725 = vmatpush1.xpose.msra.mxu0 0.0
        %726 = vmatprep.subr.mxu0 0.0
        %727 = vmatpush1.xpose.msra.mxu0 0.0
        %728 = vmatprep.subr.mxu0 0.0
        %729 = vmatpush1.xpose.msra.mxu0 0.0
        %730 = vmatprep.subr.mxu0 0.0
        %731 = vmatpush1.xpose.msra.mxu0 0.0
        %732 = vmatprep.subr.mxu0 0.0
        %733 = vmatpush1.xpose.msra.mxu0 0.0
        %734 = vmatprep.subr.mxu0 0.0
        %735 = vmatpush1.xpose.msra.mxu0 0.0
        %736 = vmatprep.subr.mxu0 0.0
        %737 = vmatpush1.xpose.msra.mxu0 0.0
        %738 = vmatprep.subr.mxu0 0.0
        %739 = vmatpush1.xpose.msra.mxu0 0.0
        %740 = vmatprep.subr.mxu0 0.0
        %741 = vmatpush1.xpose.msra.mxu0 0.0
        %742 = vmatprep.subr.mxu0 0.0
        %743 = vmatpush1.xpose.msra.mxu0 0.0
        %744 = vmatprep.subr.mxu0 0.0
        %745 = vmatpush1.xpose.msra.mxu0 0.0
        %746 = vmatprep.subr.mxu0 0.0
        %747 = vmatpush1.xpose.msra.mxu0 0.0
        %748 = vmatprep.subr.mxu0 0.0
        %749 = vmatpush1.xpose.msra.mxu0 0.0
        %750 = vmatprep.subr.mxu0 0.0
        %751 = vmatpush1.xpose.msra.mxu0 0.0
        %752 = vmatprep.subr.mxu0 0.0
        %753 = vmatpush1.xpose.msra.mxu0 0.0
        %754 = vmatprep.subr.mxu0 0.0
        %755 = vmatpush1.xpose.msra.mxu0 0.0
        %756 = vmatprep.subr.mxu0 0.0
        %757 = vmatpush1.xpose.msra.mxu0 0.0
        %758 = vmatprep.subr.mxu0 0.0
        %759 = vmatpush1.xpose.msra.mxu0 0.0
        %760 = vmatprep.subr.mxu0 0.0
        %761 = vmatpush1.xpose.msra.mxu0 0.0
        %762 = vmatprep.subr.mxu0 0.0
        %763 = vmatpush1.xpose.msra.mxu0 0.0
        %764 = vmatprep.subr.mxu0 0.0
        %765 = vmatpush1.xpose.msra.mxu0 0.0
        %766 = vmatprep.subr.mxu0 0.0
        %767 = vmatpush1.xpose.msra.mxu0 0.0
        %768 = vmatprep.mubr.f32.mxu0 0.0
        %769 = vmatmul.mubr.f32.gmra.mrb[0].mxu0 %v700
        %v770 = vpop.f32.mrb[0].mxu0
        %v771 = vadd.f32 0.0, %v770
        %v772 = vpop.f32.mrb[0].mxu0
        %773 = vdwg.mxu0
        %v774 = vsel %vm534, %v771, -inf
        %775 = vmax.xlane.f32.xlu0 %v774
        %v776 = vpop.xlane.xlu0 %775
        %v777 = vsub.f32 %v771, %v776
        %v778 = vmul.f32 %v777, 1.442695
        %v779 = vpow.pop %v778
        %v780 = vsel %vm534, %v779, 0.0
        %781 = vadd.xlane.f32.xlu0 %v780
        %v782 = vpop.xlane.xlu0 %781
        %v783 = vrcp.pop %v782
        %v784 = vmul.f32 %v779, %v783
        %785 = vrot.lane.b32.xlu0 %v528, 56
        %v786 = vpop.permute.xlu0 %785
        %v789 = vsel %vm534, %v784, 0
        %791 = vmatprep.subr.mxu0 0.0
        %792 = vmatpush1.msra.mxu0 %v786
        %793 = vmatprep.subr.mxu0 0.0
        %794 = vmatpush1.msra.mxu0 0.0
        %795 = vmatprep.subr.mxu0 0.0
        %796 = vmatpush1.msra.mxu0 0.0
        %797 = vmatprep.subr.mxu0 0.0
        %798 = vmatpush1.msra.mxu0 0.0
        %799 = vmatprep.subr.mxu0 0.0
        %800 = vmatpush1.msra.mxu0 0.0
        %801 = vmatprep.subr.mxu0 0.0
        %802 = vmatpush1.msra.mxu0 0.0
        %803 = vmatprep.subr.mxu0 0.0
        %804 = vmatpush1.msra.mxu0 0.0
        %805 = vmatprep.subr.mxu0 0.0
        %806 = vmatpush1.msra.mxu0 0.0
        %807 = vmatprep.subr.mxu0 0.0
        %808 = vmatpush1.msra.mxu0 0.0
        %809 = vmatprep.subr.mxu0 0.0
        %810 = vmatpush1.msra.mxu0 0.0
        %811 = vmatprep.subr.mxu0 0.0
        %812 = vmatpush1.msra.mxu0 0.0
        %813 = vmatprep.subr.mxu0 0.0
        %814 = vmatpush1.msra.mxu0 0.0
        %815 = vmatprep.subr.mxu0 0.0
        %816 = vmatpush1.msra.mxu0 0.0
        %817 = vmatprep.subr.mxu0 0.0
        %818 = vmatpush1.msra.mxu0 0.0
        %819 = vmatprep.subr.mxu0 0.0
        %820 = vmatpush1.msra.mxu0 0.0
        %821 = vmatprep.subr.mxu0 0.0
        %822 = vmatpush1.msra.mxu0 0.0
        %823 = vmatprep.subr.mxu0 0.0
        %824 = vmatpush1.msra.mxu0 0.0
        %825 = vmatprep.subr.mxu0 0.0
        %826 = vmatpush1.msra.mxu0 0.0
        %827 = vmatprep.subr.mxu0 0.0
        %828 = vmatpush1.msra.mxu0 0.0
        %829 = vmatprep.subr.mxu0 0.0
        %830 = vmatpush1.msra.mxu0 0.0
        %831 = vmatprep.subr.mxu0 0.0
        %832 = vmatpush1.msra.mxu0 0.0
        %833 = vmatprep.subr.mxu0 0.0
        %834 = vmatpush1.msra.mxu0 0.0
        %835 = vmatprep.subr.mxu0 0.0
        %836 = vmatpush1.msra.mxu0 0.0
        %837 = vmatprep.subr.mxu0 0.0
        %838 = vmatpush1.msra.mxu0 0.0
        %839 = vmatprep.subr.mxu0 0.0
        %840 = vmatpush1.msra.mxu0 0.0
        %841 = vmatprep.subr.mxu0 0.0
        %842 = vmatpush1.msra.mxu0 0.0
        %843 = vmatprep.subr.mxu0 0.0
        %844 = vmatpush1.msra.mxu0 0.0
        %845 = vmatprep.subr.mxu0 0.0
        %846 = vmatpush1.msra.mxu0 0.0
        %847 = vmatprep.subr.mxu0 0.0
        %848 = vmatpush1.msra.mxu0 0.0
        %849 = vmatprep.subr.mxu0 0.0
        %850 = vmatpush1.msra.mxu0 0.0
        %851 = vmatprep.subr.mxu0 0.0
        %852 = vmatpush1.msra.mxu0 0.0
        %853 = vmatprep.subr.mxu0 0.0
        %854 = vmatpush1.msra.mxu0 0.0
        %855 = vmatprep.mubr.f32.mxu0 0.0
        %856 = vmatmul.mubr.f32.gmra.mrb[0].mxu0 %v789
        %v857 = vpop.f32.mrb[0].mxu0
        %v858 = vadd.f32 0.0, %v857
        %v859 = vpop.f32.mrb[0].mxu0
        %860 = vdwg.mxu0
        %861 = vrot.lane.b32.xlu0 %v528, 112
        %v862 = vpop.permute.xlu0 %861
        %863 = vrot.lane.b32.xlu0 %v528, 80
        %v864 = vpop.permute.xlu0 %863
        %v865 = vsel %vm534, %v862, 0
        %v867 = vsel %vm534, %v864, 0
        %869 = vmatprep.subr.mxu0 0.0
        %870 = vmatpush1.xpose.msra.mxu0 %v867
        %871 = vmatprep.subr.mxu0 0.0
        %872 = vmatpush1.xpose.msra.mxu0 0.0
        %873 = vmatprep.subr.mxu0 0.0
        %874 = vmatpush1.xpose.msra.mxu0 0.0
        %875 = vmatprep.subr.mxu0 0.0
        %876 = vmatpush1.xpose.msra.mxu0 0.0
        %877 = vmatprep.subr.mxu0 0.0
        %878 = vmatpush1.xpose.msra.mxu0 0.0
        %879 = vmatprep.subr.mxu0 0.0
        %880 = vmatpush1.xpose.msra.mxu0 0.0
        %881 = vmatprep.subr.mxu0 0.0
        %882 = vmatpush1.xpose.msra.mxu0 0.0
        %883 = vmatprep.subr.mxu0 0.0
        %884 = vmatpush1.xpose.msra.mxu0 0.0
        %885 = vmatprep.subr.mxu0 0.0
        %886 = vmatpush1.xpose.msra.mxu0 0.0
        %887 = vmatprep.subr.mxu0 0.0
        %888 = vmatpush1.xpose.msra.mxu0 0.0
        %889 = vmatprep.subr.mxu0 0.0
        %890 = vmatpush1.xpose.msra.mxu0 0.0
        %891 = vmatprep.subr.mxu0 0.0
        %892 = vmatpush1.xpose.msra.mxu0 0.0
        %893 = vmatprep.subr.mxu0 0.0
        %894 = vmatpush1.xpose.msra.mxu0 0.0
        %895 = vmatprep.subr.mxu0 0.0
        %896 = vmatpush1.xpose.msra.mxu0 0.0
        %897 = vmatprep.subr.mxu0 0.0
        %898 = vmatpush1.xpose.msra.mxu0 0.0
        %899 = vmatprep.subr.mxu0 0.0
        %900 = vmatpush1.xpose.msra.mxu0 0.0
        %901 = vmatprep.subr.mxu0 0.0
        %902 = vmatpush1.xpose.msra.mxu0 0.0
        %903 = vmatprep.subr.mxu0 0.0
        %904 = vmatpush1.xpose.msra.mxu0 0.0
        %905 = vmatprep.subr.mxu0 0.0
        %906 = vmatpush1.xpose.msra.mxu0 0.0
        %907 = vmatprep.subr.mxu0 0.0
        %908 = vmatpush1.xpose.msra.mxu0 0.0
        %909 = vmatprep.subr.mxu0 0.0
        %910 = vmatpush1.xpose.msra.mxu0 0.0
        %911 = vmatprep.subr.mxu0 0.0
        %912 = vmatpush1.xpose.msra.mxu0 0.0
        %913 = vmatprep.subr.mxu0 0.0
        %914 = vmatpush1.xpose.msra.mxu0 0.0
        %915 = vmatprep.subr.mxu0 0.0
        %916 = vmatpush1.xpose.msra.mxu0 0.0
        %917 = vmatprep.subr.mxu0 0.0
        %918 = vmatpush1.xpose.msra.mxu0 0.0
        %919 = vmatprep.subr.mxu0 0.0
        %920 = vmatpush1.xpose.msra.mxu0 0.0
        %921 = vmatprep.subr.mxu0 0.0
        %922 = vmatpush1.xpose.msra.mxu0 0.0
        %923 = vmatprep.subr.mxu0 0.0
        %924 = vmatpush1.xpose.msra.mxu0 0.0
        %925 = vmatprep.subr.mxu0 0.0
        %926 = vmatpush1.xpose.msra.mxu0 0.0
        %927 = vmatprep.subr.mxu0 0.0
        %928 = vmatpush1.xpose.msra.mxu0 0.0
        %929 = vmatprep.subr.mxu0 0.0
        %930 = vmatpush1.xpose.msra.mxu0 0.0
        %931 = vmatprep.subr.mxu0 0.0
        %932 = vmatpush1.xpose.msra.mxu0 0.0
        %933 = vmatprep.mubr.f32.mxu0 0.0
        %934 = vmatmul.mubr.f32.gmra.mrb[0].mxu0 %v865
        %v935 = vpop.f32.mrb[0].mxu0
        %v936 = vadd.f32 0.0, %v935
        %v937 = vpop.f32.mrb[0].mxu0
        %938 = vdwg.mxu0
        %v939 = vsel %vm534, %v936, -inf
        %940 = vmax.xlane.f32.xlu0 %v939
        %v941 = vpop.xlane.xlu0 %940
        %v942 = vsub.f32 %v936, %v941
        %v943 = vmul.f32 %v942, 1.442695
        %v944 = vpow.pop %v943
        %v945 = vsel %vm534, %v944, 0.0
        %946 = vadd.xlane.f32.xlu0 %v945
        %v947 = vpop.xlane.xlu0 %946
        %v948 = vrcp.pop %v947
        %v949 = vmul.f32 %v944, %v948
        %950 = vrot.lane.b32.xlu0 %v528, 48
        %v951 = vpop.permute.xlu0 %950
        %v954 = vsel %vm534, %v949, 0
        %956 = vmatprep.subr.mxu0 0.0
        %957 = vmatpush1.msra.mxu0 %v951
        %958 = vmatprep.subr.mxu0 0.0
        %959 = vmatpush1.msra.mxu0 0.0
        %960 = vmatprep.subr.mxu0 0.0
        %961 = vmatpush1.msra.mxu0 0.0
        %962 = vmatprep.subr.mxu0 0.0
        %963 = vmatpush1.msra.mxu0 0.0
        %964 = vmatprep.subr.mxu0 0.0
        %965 = vmatpush1.msra.mxu0 0.0
        %966 = vmatprep.subr.mxu0 0.0
        %967 = vmatpush1.msra.mxu0 0.0
        %968 = vmatprep.subr.mxu0 0.0
        %969 = vmatpush1.msra.mxu0 0.0
        %970 = vmatprep.subr.mxu0 0.0
        %971 = vmatpush1.msra.mxu0 0.0
        %972 = vmatprep.subr.mxu0 0.0
        %973 = vmatpush1.msra.mxu0 0.0
        %974 = vmatprep.subr.mxu0 0.0
        %975 = vmatpush1.msra.mxu0 0.0
        %976 = vmatprep.subr.mxu0 0.0
        %977 = vmatpush1.msra.mxu0 0.0
        %978 = vmatprep.subr.mxu0 0.0
        %979 = vmatpush1.msra.mxu0 0.0
        %980 = vmatprep.subr.mxu0 0.0
        %981 = vmatpush1.msra.mxu0 0.0
        %982 = vmatprep.subr.mxu0 0.0
        %983 = vmatpush1.msra.mxu0 0.0
        %984 = vmatprep.subr.mxu0 0.0
        %985 = vmatpush1.msra.mxu0 0.0
        %986 = vmatprep.subr.mxu0 0.0
        %987 = vmatpush1.msra.mxu0 0.0
        %988 = vmatprep.subr.mxu0 0.0
        %989 = vmatpush1.msra.mxu0 0.0
        %990 = vmatprep.subr.mxu0 0.0
        %991 = vmatpush1.msra.mxu0 0.0
        %992 = vmatprep.subr.mxu0 0.0
        %993 = vmatpush1.msra.mxu0 0.0
        %994 = vmatprep.subr.mxu0 0.0
        %995 = vmatpush1.msra.mxu0 0.0
        %996 = vmatprep.subr.mxu0 0.0
        %997 = vmatpush1.msra.mxu0 0.0
        %998 = vmatprep.subr.mxu0 0.0
        %999 = vmatpush1.msra.mxu0 0.0
        %1000 = vmatprep.subr.mxu0 0.0
        %1001 = vmatpush1.msra.mxu0 0.0
        %1002 = vmatprep.subr.mxu0 0.0
        %1003 = vmatpush1.msra.mxu0 0.0
        %1004 = vmatprep.subr.mxu0 0.0
        %1005 = vmatpush1.msra.mxu0 0.0
        %1006 = vmatprep.subr.mxu0 0.0
        %1007 = vmatpush1.msra.mxu0 0.0
        %1008 = vmatprep.subr.mxu0 0.0
        %1009 = vmatpush1.msra.mxu0 0.0
        %1010 = vmatprep.subr.mxu0 0.0
        %1011 = vmatpush1.msra.mxu0 0.0
        %1012 = vmatprep.subr.mxu0 0.0
        %1013 = vmatpush1.msra.mxu0 0.0
        %1014 = vmatprep.subr.mxu0 0.0
        %1015 = vmatpush1.msra.mxu0 0.0
        %1016 = vmatprep.subr.mxu0 0.0
        %1017 = vmatpush1.msra.mxu0 0.0
        %1018 = vmatprep.subr.mxu0 0.0
        %1019 = vmatpush1.msra.mxu0 0.0
        %1020 = vmatprep.mubr.f32.mxu0 0.0
        %1021 = vmatmul.mubr.f32.gmra.mrb[0].mxu0 %v954
        %v1022 = vpop.f32.mrb[0].mxu0
        %v1023 = vadd.f32 0.0, %v1022
        %v1024 = vpop.f32.mrb[0].mxu0
        %1025 = vdwg.mxu0
        %1026 = vrot.lane.b32.xlu0 %v528, 104
        %v1027 = vpop.permute.xlu0 %1026
        %1028 = vrot.lane.b32.xlu0 %v528, 72
        %v1029 = vpop.permute.xlu0 %1028
        %v1030 = vsel %vm534, %v1027, 0
        %v1032 = vsel %vm534, %v1029, 0
        %1034 = vmatprep.subr.mxu0 0.0
        %1035 = vmatpush1.xpose.msra.mxu0 %v1032
        %1036 = vmatprep.subr.mxu0 0.0
        %1037 = vmatpush1.xpose.msra.mxu0 0.0
        %1038 = vmatprep.subr.mxu0 0.0
        %1039 = vmatpush1.xpose.msra.mxu0 0.0
        %1040 = vmatprep.subr.mxu0 0.0
        %1041 = vmatpush1.xpose.msra.mxu0 0.0
        %1042 = vmatprep.subr.mxu0 0.0
        %1043 = vmatpush1.xpose.msra.mxu0 0.0
        %1044 = vmatprep.subr.mxu0 0.0
        %1045 = vmatpush1.xpose.msra.mxu0 0.0
        %1046 = vmatprep.subr.mxu0 0.0
        %1047 = vmatpush1.xpose.msra.mxu0 0.0
        %1048 = vmatprep.subr.mxu0 0.0
        %1049 = vmatpush1.xpose.msra.mxu0 0.0
        %1050 = vmatprep.subr.mxu0 0.0
        %1051 = vmatpush1.xpose.msra.mxu0 0.0
        %1052 = vmatprep.subr.mxu0 0.0
        %1053 = vmatpush1.xpose.msra.mxu0 0.0
        %1054 = vmatprep.subr.mxu0 0.0
        %1055 = vmatpush1.xpose.msra.mxu0 0.0
        %1056 = vmatprep.subr.mxu0 0.0
        %1057 = vmatpush1.xpose.msra.mxu0 0.0
        %1058 = vmatprep.subr.mxu0 0.0
        %1059 = vmatpush1.xpose.msra.mxu0 0.0
        %1060 = vmatprep.subr.mxu0 0.0
        %1061 = vmatpush1.xpose.msra.mxu0 0.0
        %1062 = vmatprep.subr.mxu0 0.0
        %1063 = vmatpush1.xpose.msra.mxu0 0.0
        %1064 = vmatprep.subr.mxu0 0.0
        %1065 = vmatpush1.xpose.msra.mxu0 0.0
        %1066 = vmatprep.subr.mxu0 0.0
        %1067 = vmatpush1.xpose.msra.mxu0 0.0
        %1068 = vmatprep.subr.mxu0 0.0
        %1069 = vmatpush1.xpose.msra.mxu0 0.0
        %1070 = vmatprep.subr.mxu0 0.0
        %1071 = vmatpush1.xpose.msra.mxu0 0.0
        %1072 = vmatprep.subr.mxu0 0.0
        %1073 = vmatpush1.xpose.msra.mxu0 0.0
        %1074 = vmatprep.subr.mxu0 0.0
        %1075 = vmatpush1.xpose.msra.mxu0 0.0
        %1076 = vmatprep.subr.mxu0 0.0
        %1077 = vmatpush1.xpose.msra.mxu0 0.0
        %1078 = vmatprep.subr.mxu0 0.0
        %1079 = vmatpush1.xpose.msra.mxu0 0.0
        %1080 = vmatprep.subr.mxu0 0.0
        %1081 = vmatpush1.xpose.msra.mxu0 0.0
        %1082 = vmatprep.subr.mxu0 0.0
        %1083 = vmatpush1.xpose.msra.mxu0 0.0
        %1084 = vmatprep.subr.mxu0 0.0
        %1085 = vmatpush1.xpose.msra.mxu0 0.0
        %1086 = vmatprep.subr.mxu0 0.0
        %1087 = vmatpush1.xpose.msra.mxu0 0.0
        %1088 = vmatprep.subr.mxu0 0.0
        %1089 = vmatpush1.xpose.msra.mxu0 0.0
        %1090 = vmatprep.subr.mxu0 0.0
        %1091 = vmatpush1.xpose.msra.mxu0 0.0
        %1092 = vmatprep.subr.mxu0 0.0
        %1093 = vmatpush1.xpose.msra.mxu0 0.0
        %1094 = vmatprep.subr.mxu0 0.0
        %1095 = vmatpush1.xpose.msra.mxu0 0.0
        %1096 = vmatprep.subr.mxu0 0.0
        %1097 = vmatpush1.xpose.msra.mxu0 0.0
        %1098 = vmatprep.mubr.f32.mxu0 0.0
        %1099 = vmatmul.mubr.f32.gmra.mrb[0].mxu0 %v1030
        %v1100 = vpop.f32.mrb[0].mxu0
        %v1101 = vadd.f32 0.0, %v1100
        %v1102 = vpop.f32.mrb[0].mxu0
        %1103 = vdwg.mxu0
        %v1104 = vsel %vm534, %v1101, -inf
        %1105 = vmax.xlane.f32.xlu0 %v1104
        %v1106 = vpop.xlane.xlu0 %1105
        %v1107 = vsub.f32 %v1101, %v1106
        %v1108 = vmul.f32 %v1107, 1.442695
        %v1109 = vpow.pop %v1108
        %v1110 = vsel %vm534, %v1109, 0.0
        %1111 = vadd.xlane.f32.xlu0 %v1110
        %v1112 = vpop.xlane.xlu0 %1111
        %v1113 = vrcp.pop %v1112
        %v1114 = vmul.f32 %v1109, %v1113
        %1115 = vrot.lane.b32.xlu0 %v528, 40
        %v1116 = vpop.permute.xlu0 %1115
        %v1119 = vsel %vm534, %v1114, 0
        %1121 = vmatprep.subr.mxu0 0.0
        %1122 = vmatpush1.msra.mxu0 %v1116
        %1123 = vmatprep.subr.mxu0 0.0
        %1124 = vmatpush1.msra.mxu0 0.0
        %1125 = vmatprep.subr.mxu0 0.0
        %1126 = vmatpush1.msra.mxu0 0.0
        %1127 = vmatprep.subr.mxu0 0.0
        %1128 = vmatpush1.msra.mxu0 0.0
        %1129 = vmatprep.subr.mxu0 0.0
        %1130 = vmatpush1.msra.mxu0 0.0
        %1131 = vmatprep.subr.mxu0 0.0
        %1132 = vmatpush1.msra.mxu0 0.0
        %1133 = vmatprep.subr.mxu0 0.0
        %1134 = vmatpush1.msra.mxu0 0.0
        %1135 = vmatprep.subr.mxu0 0.0
        %1136 = vmatpush1.msra.mxu0 0.0
        %1137 = vmatprep.subr.mxu0 0.0
        %1138 = vmatpush1.msra.mxu0 0.0
        %1139 = vmatprep.subr.mxu0 0.0
        %1140 = vmatpush1.msra.mxu0 0.0
        %1141 = vmatprep.subr.mxu0 0.0
        %1142 = vmatpush1.msra.mxu0 0.0
        %1143 = vmatprep.subr.mxu0 0.0
        %1144 = vmatpush1.msra.mxu0 0.0
        %1145 = vmatprep.subr.mxu0 0.0
        %1146 = vmatpush1.msra.mxu0 0.0
        %1147 = vmatprep.subr.mxu0 0.0
        %1148 = vmatpush1.msra.mxu0 0.0
        %1149 = vmatprep.subr.mxu0 0.0
        %1150 = vmatpush1.msra.mxu0 0.0
        %1151 = vmatprep.subr.mxu0 0.0
        %1152 = vmatpush1.msra.mxu0 0.0
        %1153 = vmatprep.subr.mxu0 0.0
        %1154 = vmatpush1.msra.mxu0 0.0
        %1155 = vmatprep.subr.mxu0 0.0
        %1156 = vmatpush1.msra.mxu0 0.0
        %1157 = vmatprep.subr.mxu0 0.0
        %1158 = vmatpush1.msra.mxu0 0.0
        %1159 = vmatprep.subr.mxu0 0.0
        %1160 = vmatpush1.msra.mxu0 0.0
        %1161 = vmatprep.subr.mxu0 0.0
        %1162 = vmatpush1.msra.mxu0 0.0
        %1163 = vmatprep.subr.mxu0 0.0
        %1164 = vmatpush1.msra.mxu0 0.0
        %1165 = vmatprep.subr.mxu0 0.0
        %1166 = vmatpush1.msra.mxu0 0.0
        %1167 = vmatprep.subr.mxu0 0.0
        %1168 = vmatpush1.msra.mxu0 0.0
        %1169 = vmatprep.subr.mxu0 0.0
        %1170 = vmatpush1.msra.mxu0 0.0
        %1171 = vmatprep.subr.mxu0 0.0
        %1172 = vmatpush1.msra.mxu0 0.0
        %1173 = vmatprep.subr.mxu0 0.0
        %1174 = vmatpush1.msra.mxu0 0.0
        %1175 = vmatprep.subr.mxu0 0.0
        %1176 = vmatpush1.msra.mxu0 0.0
        %1177 = vmatprep.subr.mxu0 0.0
        %1178 = vmatpush1.msra.mxu0 0.0
        %1179 = vmatprep.subr.mxu0 0.0
        %1180 = vmatpush1.msra.mxu0 0.0
        %1181 = vmatprep.subr.mxu0 0.0
        %1182 = vmatpush1.msra.mxu0 0.0
        %1183 = vmatprep.subr.mxu0 0.0
        %1184 = vmatpush1.msra.mxu0 0.0
        %1185 = vmatprep.mubr.f32.mxu0 0.0
        %1186 = vmatmul.mubr.f32.gmra.mrb[0].mxu0 %v1119
        %v1187 = vpop.f32.mrb[0].mxu0
        %v1188 = vadd.f32 0.0, %v1187
        %v1189 = vpop.f32.mrb[0].mxu0
        %1190 = vdwg.mxu0
        %1192 = vrot.lane.b32.xlu0 %v858, 8
        %v1193 = vpop.permute.xlu0 %1192
        %1196 = vrot.lane.b32.xlu0 %v1023, 16
        %v1197 = vpop.permute.xlu0 %1196
        %1200 = vrot.lane.b32.xlu0 %v1188, 24
        %v1201 = vpop.permute.xlu0 %1200
        %v1203 = vsel %vm534, %v693, %v1193
        %vm1204 = vcmask 130048
        %v1205 = vsel %vm1204, %v1203, %v1197
        %vm1206 = vcmask 195584
        %v1207 = vsel %vm1206, %v1205, %v1201
        %v1208 = vld [vmem:[%s437] sm:$0x3f]
        %v1209 = vld [vmem:[%s420] sm:$0xff]
        %v1210 = vld [vmem:[%s420 + $0x8] sm:$0xff]
        %v1211 = vld [vmem:[%s420 + $0x10] sm:$0xff]
        %v1212 = vld [vmem:[%s420 + $0x18] sm:$0xff]
        %v1213 = vlaneseq
        %v1214 = vshrl.u32 %v1213, 7
        %v1215 = vsub.s32 0, %v1214
        %v1216 = vrot.slane %v1208, %v1215
        %v1218 = vsel %vm457, %v1207, 0
        %1220 = vmatprep.subr.mxu0 0.0
        %1221 = vmatpush1.msra.mxu0 %v1209
        %1222 = vmatprep.subr.mxu0 0.0
        %1223 = vmatpush1.msra.mxu0 %v1210
        %1224 = vmatprep.subr.mxu0 0.0
        %1225 = vmatpush1.msra.mxu0 %v1211
        %1226 = vmatprep.subr.mxu0 0.0
        %1227 = vmatpush1.msra.mxu0 %v1212
        %1228 = vmatprep.subr.mxu0 0.0
        %1229 = vmatpush1.msra.mxu0 0.0
        %1230 = vmatprep.subr.mxu0 0.0
        %1231 = vmatpush1.msra.mxu0 0.0
        %1232 = vmatprep.subr.mxu0 0.0
        %1233 = vmatpush1.msra.mxu0 0.0
        %1234 = vmatprep.subr.mxu0 0.0
        %1235 = vmatpush1.msra.mxu0 0.0
        %1236 = vmatprep.subr.mxu0 0.0
        %1237 = vmatpush1.msra.mxu0 0.0
        %1238 = vmatprep.subr.mxu0 0.0
        %1239 = vmatpush1.msra.mxu0 0.0
        %1240 = vmatprep.subr.mxu0 0.0
        %1241 = vmatpush1.msra.mxu0 0.0
        %1242 = vmatprep.subr.mxu0 0.0
        %1243 = vmatpush1.msra.mxu0 0.0
        %1244 = vmatprep.subr.mxu0 0.0
        %1245 = vmatpush1.msra.mxu0 0.0
        %1246 = vmatprep.subr.mxu0 0.0
        %1247 = vmatpush1.msra.mxu0 0.0
        %1248 = vmatprep.subr.mxu0 0.0
        %1249 = vmatpush1.msra.mxu0 0.0
        %1250 = vmatprep.subr.mxu0 0.0
        %1251 = vmatpush1.msra.mxu0 0.0
        %1252 = vmatprep.subr.mxu0 0.0
        %1253 = vmatpush1.msra.mxu0 0.0
        %1254 = vmatprep.subr.mxu0 0.0
        %1255 = vmatpush1.msra.mxu0 0.0
        %1256 = vmatprep.subr.mxu0 0.0
        %1257 = vmatpush1.msra.mxu0 0.0
        %1258 = vmatprep.subr.mxu0 0.0
        %1259 = vmatpush1.msra.mxu0 0.0
        %1260 = vmatprep.subr.mxu0 0.0
        %1261 = vmatpush1.msra.mxu0 0.0
        %1262 = vmatprep.subr.mxu0 0.0
        %1263 = vmatpush1.msra.mxu0 0.0
        %1264 = vmatprep.subr.mxu0 0.0
        %1265 = vmatpush1.msra.mxu0 0.0
        %1266 = vmatprep.subr.mxu0 0.0
        %1267 = vmatpush1.msra.mxu0 0.0
        %1268 = vmatprep.subr.mxu0 0.0
        %1269 = vmatpush1.msra.mxu0 0.0
        %1270 = vmatprep.subr.mxu0 0.0
        %1271 = vmatpush1.msra.mxu0 0.0
        %1272 = vmatprep.subr.mxu0 0.0
        %1273 = vmatpush1.msra.mxu0 0.0
        %1274 = vmatprep.subr.mxu0 0.0
        %1275 = vmatpush1.msra.mxu0 0.0
        %1276 = vmatprep.subr.mxu0 0.0
        %1277 = vmatpush1.msra.mxu0 0.0
        %1278 = vmatprep.subr.mxu0 0.0
        %1279 = vmatpush1.msra.mxu0 0.0
        %1280 = vmatprep.subr.mxu0 0.0
        %1281 = vmatpush1.msra.mxu0 0.0
        %1282 = vmatprep.subr.mxu0 0.0
        %1283 = vmatpush1.msra.mxu0 0.0
        %1284 = vmatprep.mubr.f32.mxu0 0.0
        %1285 = vmatmul.mubr.f32.gmra.mrb[0].mxu0 %v1218
        %v1286 = vpop.f32.mrb[0].mxu0
        %v1287 = vadd.f32 %v1216, %v1286
        %v1288 = vpop.f32.mrb[0].mxu0
        %1289 = vdwg.mxu0
        %v1290 = vadd.f32 %v445, %v1287
        %v1291 = vsel %vm457, %v1290, 0.0
        %1292 = vadd.xlane.f32.xlu0 %v1291
        %v1293 = vpop.xlane.xlu0 %1292
        %v1294 = vrcp.pop 32.0
        %v1295 = vmul.f32 %v1293, %v1294
        %v1296 = vsub.f32 %v1290, %v1295
        %v1297 = vmul.f32 %v1296, %v1296
        %v1298 = vsel %vm457, %v1297, 0.0
        %1299 = vadd.xlane.f32.xlu0 %v1298
        %v1300 = vpop.xlane.xlu0 %1299
        %v1301 = vmul.f32 %v1300, %v1294
        %v1302 = vadd.f32 %v1301, 1e-05
        %v1303 = vrsqrt.pop %v1302
        %v1304 = vmul.f32 %v1296, %v1303
        %v1305 = vlaneseq
        %v1306 = vshrl.u32 %v1305, 7
        %v1307 = vsub.s32 1, %v1306
        %v1308 = vrot.slane %v1208, %v1307
        %v1309 = vmul.f32 %v1304, %v1308
        %v1310 = vlaneseq
        %v1311 = vshrl.u32 %v1310, 7
        %v1312 = vsub.s32 2, %v1311
        %v1313 = vrot.slane %v1208, %v1312
        %v1314 = vadd.f32 %v1309, %v1313
        %v1315 = vld [vmem:[%s425] sm:$0xff]
        %v1316 = vld [vmem:[%s425 + $0x8] sm:$0xff]
        %v1317 = vld [vmem:[%s425 + $0x10] sm:$0xff]
        %v1318 = vld [vmem:[%s425 + $0x18] sm:$0xff]
        %v1319 = vld [vmem:[%s428] sm:$0x1]
        %v1321 = vlaneseq
        %v1322 = vshrl.u32 %v1321, 7
        %v1323 = vsub.s32 0, %v1322
        %v1324 = vrot.slane %v1319, %v1323
        %v1327 = vsel %vm457, %v1314, 0
        %1329 = vmatprep.subr.mxu0 0.0
        %1330 = vmatpush1.msra.mxu0 %v1315
        %1331 = vmatprep.subr.mxu0 0.0
        %1332 = vmatpush1.msra.mxu0 %v1316
        %1333 = vmatprep.subr.mxu0 0.0
        %1334 = vmatpush1.msra.mxu0 %v1317
        %1335 = vmatprep.subr.mxu0 0.0
        %1336 = vmatpush1.msra.mxu0 %v1318
        %1337 = vmatprep.subr.mxu0 0.0
        %1338 = vmatpush1.msra.mxu0 0.0
        %1339 = vmatprep.subr.mxu0 0.0
        %1340 = vmatpush1.msra.mxu0 0.0
        %1341 = vmatprep.subr.mxu0 0.0
        %1342 = vmatpush1.msra.mxu0 0.0
        %1343 = vmatprep.subr.mxu0 0.0
        %1344 = vmatpush1.msra.mxu0 0.0
        %1345 = vmatprep.subr.mxu0 0.0
        %1346 = vmatpush1.msra.mxu0 0.0
        %1347 = vmatprep.subr.mxu0 0.0
        %1348 = vmatpush1.msra.mxu0 0.0
        %1349 = vmatprep.subr.mxu0 0.0
        %1350 = vmatpush1.msra.mxu0 0.0
        %1351 = vmatprep.subr.mxu0 0.0
        %1352 = vmatpush1.msra.mxu0 0.0
        %1353 = vmatprep.subr.mxu0 0.0
        %1354 = vmatpush1.msra.mxu0 0.0
        %1355 = vmatprep.subr.mxu0 0.0
        %1356 = vmatpush1.msra.mxu0 0.0
        %1357 = vmatprep.subr.mxu0 0.0
        %1358 = vmatpush1.msra.mxu0 0.0
        %1359 = vmatprep.subr.mxu0 0.0
        %1360 = vmatpush1.msra.mxu0 0.0
        %1361 = vmatprep.subr.mxu0 0.0
        %1362 = vmatpush1.msra.mxu0 0.0
        %1363 = vmatprep.subr.mxu0 0.0
        %1364 = vmatpush1.msra.mxu0 0.0
        %1365 = vmatprep.subr.mxu0 0.0
        %1366 = vmatpush1.msra.mxu0 0.0
        %1367 = vmatprep.subr.mxu0 0.0
        %1368 = vmatpush1.msra.mxu0 0.0
        %1369 = vmatprep.subr.mxu0 0.0
        %1370 = vmatpush1.msra.mxu0 0.0
        %1371 = vmatprep.subr.mxu0 0.0
        %1372 = vmatpush1.msra.mxu0 0.0
        %1373 = vmatprep.subr.mxu0 0.0
        %1374 = vmatpush1.msra.mxu0 0.0
        %1375 = vmatprep.subr.mxu0 0.0
        %1376 = vmatpush1.msra.mxu0 0.0
        %1377 = vmatprep.subr.mxu0 0.0
        %1378 = vmatpush1.msra.mxu0 0.0
        %1379 = vmatprep.subr.mxu0 0.0
        %1380 = vmatpush1.msra.mxu0 0.0
        %1381 = vmatprep.subr.mxu0 0.0
        %1382 = vmatpush1.msra.mxu0 0.0
        %1383 = vmatprep.subr.mxu0 0.0
        %1384 = vmatpush1.msra.mxu0 0.0
        %1385 = vmatprep.subr.mxu0 0.0
        %1386 = vmatpush1.msra.mxu0 0.0
        %1387 = vmatprep.subr.mxu0 0.0
        %1388 = vmatpush1.msra.mxu0 0.0
        %1389 = vmatprep.subr.mxu0 0.0
        %1390 = vmatpush1.msra.mxu0 0.0
        %1391 = vmatprep.subr.mxu0 0.0
        %1392 = vmatpush1.msra.mxu0 0.0
        %1393 = vmatprep.mubr.f32.mxu0 0.0
        %1394 = vmatmul.mubr.f32.gmra.mrb[0].mxu0 %v1327
        %v1395 = vpop.f32.mrb[0].mxu0
        %v1396 = vadd.f32 %v1324, %v1395
        %v1397 = vpop.f32.mrb[0].mxu0
        %1398 = vdwg.mxu0
        %v1399 = vmax.f32 %v1396, 0.0
        %v1400 = vld [vmem:[%s433] sm:$0xff]
        %v1401 = vld [vmem:[%s433 + $0x8] sm:$0xff]
        %v1402 = vld [vmem:[%s433 + $0x10] sm:$0xff]
        %v1403 = vld [vmem:[%s433 + $0x18] sm:$0xff]
        %v1404 = vld [vmem:[%s433 + $0x20] sm:$0xff]
        %v1405 = vld [vmem:[%s433 + $0x28] sm:$0xff]
        %v1406 = vld [vmem:[%s433 + $0x30] sm:$0xff]
        %v1407 = vld [vmem:[%s433 + $0x38] sm:$0xff]
        %v1408 = vlaneseq
        %v1409 = vshrl.u32 %v1408, 7
        %v1410 = vsub.s32 3, %v1409
        %v1411 = vrot.slane %v1208, %v1410
        %vm1412 = vcmask 523264
        %v1414 = vsel %vm1412, %v1399, 0
        %1416 = vmatprep.subr.mxu0 0.0
        %1417 = vmatpush1.msra.mxu0 %v1400
        %1418 = vmatprep.subr.mxu0 0.0
        %1419 = vmatpush1.msra.mxu0 %v1401
        %1420 = vmatprep.subr.mxu0 0.0
        %1421 = vmatpush1.msra.mxu0 %v1402
        %1422 = vmatprep.subr.mxu0 0.0
        %1423 = vmatpush1.msra.mxu0 %v1403
        %1424 = vmatprep.subr.mxu0 0.0
        %1425 = vmatpush1.msra.mxu0 %v1404
        %1426 = vmatprep.subr.mxu0 0.0
        %1427 = vmatpush1.msra.mxu0 %v1405
        %1428 = vmatprep.subr.mxu0 0.0
        %1429 = vmatpush1.msra.mxu0 %v1406
        %1430 = vmatprep.subr.mxu0 0.0
        %1431 = vmatpush1.msra.mxu0 %v1407
        %1432 = vmatprep.subr.mxu0 0.0
        %1433 = vmatpush1.msra.mxu0 0.0
        %1434 = vmatprep.subr.mxu0 0.0
        %1435 = vmatpush1.msra.mxu0 0.0
        %1436 = vmatprep.subr.mxu0 0.0
        %1437 = vmatpush1.msra.mxu0 0.0
        %1438 = vmatprep.subr.mxu0 0.0
        %1439 = vmatpush1.msra.mxu0 0.0
        %1440 = vmatprep.subr.mxu0 0.0
        %1441 = vmatpush1.msra.mxu0 0.0
        %1442 = vmatprep.subr.mxu0 0.0
        %1443 = vmatpush1.msra.mxu0 0.0
        %1444 = vmatprep.subr.mxu0 0.0
        %1445 = vmatpush1.msra.mxu0 0.0
        %1446 = vmatprep.subr.mxu0 0.0
        %1447 = vmatpush1.msra.mxu0 0.0
        %1448 = vmatprep.subr.mxu0 0.0
        %1449 = vmatpush1.msra.mxu0 0.0
        %1450 = vmatprep.subr.mxu0 0.0
        %1451 = vmatpush1.msra.mxu0 0.0
        %1452 = vmatprep.subr.mxu0 0.0
        %1453 = vmatpush1.msra.mxu0 0.0
        %1454 = vmatprep.subr.mxu0 0.0
        %1455 = vmatpush1.msra.mxu0 0.0
        %1456 = vmatprep.subr.mxu0 0.0
        %1457 = vmatpush1.msra.mxu0 0.0
        %1458 = vmatprep.subr.mxu0 0.0
        %1459 = vmatpush1.msra.mxu0 0.0
        %1460 = vmatprep.subr.mxu0 0.0
        %1461 = vmatpush1.msra.mxu0 0.0
        %1462 = vmatprep.subr.mxu0 0.0
        %1463 = vmatpush1.msra.mxu0 0.0
        %1464 = vmatprep.subr.mxu0 0.0
        %1465 = vmatpush1.msra.mxu0 0.0
        %1466 = vmatprep.subr.mxu0 0.0
        %1467 = vmatpush1.msra.mxu0 0.0
        %1468 = vmatprep.subr.mxu0 0.0
        %1469 = vmatpush1.msra.mxu0 0.0
        %1470 = vmatprep.subr.mxu0 0.0
        %1471 = vmatpush1.msra.mxu0 0.0
        %1472 = vmatprep.subr.mxu0 0.0
        %1473 = vmatpush1.msra.mxu0 0.0
        %1474 = vmatprep.subr.mxu0 0.0
        %1475 = vmatpush1.msra.mxu0 0.0
        %1476 = vmatprep.subr.mxu0 0.0
        %1477 = vmatpush1.msra.mxu0 0.0
        %1478 = vmatprep.subr.mxu0 0.0
        %1479 = vmatpush1.msra.mxu0 0.0
        %1480 = vmatprep.mubr.f32.mxu0 0.0
        %1481 = vmatmul.mubr.f32.gmra.mrb[0].mxu0 %v1414
        %v1482 = vpop.f32.mrb[0].mxu0
        %v1483 = vadd.f32 %v1411, %v1482
        %v1484 = vpop.f32.mrb[0].mxu0
        %1485 = vdwg.mxu0
        %v1486 = vadd.f32 %v1314, %v1483
        %v1487 = vsel %vm457, %v1486, 0.0
        %1488 = vadd.xlane.f32.xlu0 %v1487
        %v1489 = vpop.xlane.xlu0 %1488
        %v1490 = vmul.f32 %v1489, %v1294
        %v1491 = vsub.f32 %v1486, %v1490
        %v1492 = vmul.f32 %v1491, %v1491
        %v1493 = vsel %vm457, %v1492, 0.0
        %1494 = vadd.xlane.f32.xlu0 %v1493
        %v1495 = vpop.xlane.xlu0 %1494
        %v1496 = vmul.f32 %v1495, %v1294
        %v1497 = vadd.f32 %v1496, 1e-05
        %v1498 = vrsqrt.pop %v1497
        %v1499 = vmul.f32 %v1491, %v1498
        %v1500 = vlaneseq
        %v1501 = vshrl.u32 %v1500, 7
        %v1502 = vsub.s32 4, %v1501
        %v1503 = vrot.slane %v1208, %v1502
        %v1504 = vmul.f32 %v1499, %v1503
        %v1505 = vlaneseq
        %v1506 = vshrl.u32 %v1505, 7
        %v1507 = vsub.s32 5, %v1506
        %v1508 = vrot.slane %v1208, %v1507
        %v1509 = vadd.f32 %v1504, %v1508
        %1510 = vst.msk [vmem:[%s403] sm:$0xff] %vm457, %v1509
        %s1511 = sand.u32 %s250, 1
        %s1512 = scalar_lea.sflag [#allocation3], %s1511
        %s1513 = sand.u32 %s250, 1
        %s1514 = smul.addr %s1513, 8
        %s1515 = scalar_lea.vmem [#allocation2], %s1514
        // Predicated region
        $region57: #{tpu_custom_call.1} parent=51 // pred_check
          %p1516 = pneg %p260
        $region58: #{tpu_custom_call.1} parent=51 // pred_check_branch
          %1518 = sbr.rel (%p1516) target = $region60
        $region59: #{tpu_custom_call.1} parent=51 // pred_region
          %s1520 = ssub.s32 128, 128
          %1521 = vsyncadd %s1512, %s1520
          %s1522 = smul.addr %s26, 128
          %s1523 = scalar_lea.hbm %s8, %s1522
          %s1525 = sshll.u32 %s1515, 4
          %s1526 = int_to_ptr.vmem [resolvable:$true] %s1525
          %1528 = dma.vmem_to_hbm [thread:$0]  %s1526, 128, %s1523, %s1512
        $region60: #{tpu_custom_call.1} parent=51 // pred_fallthru
          _
      $region52: #{tpu_custom_call.1} parent=5 // pred_fallthru
        _
      %p1529 = scmp.le.s32.totalorder 2, %s17
      // Predicated region
      $region61: #{tpu_custom_call.1} parent=5 // pred_check
        %p1530 = pneg %p1529
      $region62: #{tpu_custom_call.1} parent=5 // pred_check_branch
        %1532 = sbr.rel (%p1530) target = $region64
      $region63: #{tpu_custom_call.1} parent=5 // pred_region
        %s1533 = ssub.s32 %s17, 2
        // Predicated region
        $region65: #{tpu_custom_call.1} parent=63 // pred_check
          %p1534 = pneg %p266
        $region66: #{tpu_custom_call.1} parent=63 // pred_check_branch
          %1536 = sbr.rel (%p1534) target = $region68
        $region67: #{tpu_custom_call.1} parent=63 // pred_region
          %s1537 = sand.u32 %s251, 1
          %s1538 = scalar_lea.sflag [#allocation3], %s1537
          %s1539 = sand.u32 %s251, 1
          %s1540 = smul.addr %s1539, 8
          %s1541 = scalar_lea.vmem [#allocation2], %s1540
          %1542 = dma.done %s1538, 128
        $region68: #{tpu_custom_call.1} parent=63 // pred_fallthru
          _
      $region64: #{tpu_custom_call.1} parent=5 // pred_fallthru
        _
    $region6: #{tpu_custom_call.1} parent=1 // loop_footer
      %s21 = sadd.s32 1, %s17
    $region7: #{tpu_custom_call.1} parent=1 // loop_footer_branch
      %16 = sbr.rel target = $region3
    $region8: #{tpu_custom_call.1} parent=1 // loop_exit
      _
    %1543 = vsyncpa [#allocation3], 1
    %s1544 = scalar_lea.sflag [#allocation3], 1
    %1545 = vsyncpa %s1544, 1

</llo_original>
